<compile_context>
chip_gen: v7x
topology: tpu7x:2x2x1
jax: 0.10.0
libtpu: 0.0.40
codegen_flags: <defaults>
</compile_context>

<pallas_src>
import functools

import jax
import jax.numpy as jnp
from jax.experimental import pallas as pl
from jax.experimental.pallas import tpu as pltpu

LN_EPS = 1e-5  # torch.nn.LayerNorm default


def _layernorm(x, g, b):
    mu = jnp.mean(x, axis=-1, keepdims=True)
    var = jnp.mean(jnp.square(x - mu), axis=-1, keepdims=True)
    return (x - mu) * jax.lax.rsqrt(var + LN_EPS) * g + b


def _sigmoid(x):
    # numerically stable sigmoid via tanh (single EUP transcendental)
    return 0.5 * (jnp.tanh(0.5 * x) + 1.0)


def _silu(x):
    return x * _sigmoid(x)


# --------------------------- stage 1: per-batch tile ---------------------------

def stage1_kernel(N, H,
                  x_ref, ln_in_g, ln_in_b,
                  w_lr, b_lr,
                  conv_w, conv_b,
                  w_ll5, b_ll5,
                  w_v, b_v,
                  ln1_g, ln1_b,
                  inter_ref, stats_ref):
    # ln1 rows: 0=lni 1=lno 2=ln_c 3=ln_n
    x = _layernorm(x_ref[...], ln_in_g[0, :], ln_in_b[0, :])          # (N, D)

    # fused left||right projection: (N, D) @ (D, 2H) on the MXU (bf16, f32 acc)
    lr = jnp.dot(x.astype(jnp.bfloat16), w_lr[...],
                 preferred_element_type=jnp.float32) + b_lr[0, :]
    left = lr[:, :H]
    right = _silu(lr[:, H:])

    # depthwise 3-tap Conv1d (padding='same', groups=H) along the seq axis.
    # pltpu.roll (XLU) + iota edge masks instead of concatenate copies.
    row = jax.lax.broadcasted_iota(jnp.int32, (N, H), 0)
    prev = jnp.where(row == 0, 0.0, pltpu.roll(left, shift=1, axis=0))      # left[n-1]
    nxt = jnp.where(row == N - 1, 0.0, pltpu.roll(left, shift=N - 1, axis=0))  # left[n+1]
    conv = (prev * conv_w[0, :] + left * conv_w[1, :] + nxt * conv_w[2, :]
            + conv_b[0, :])
    left_left = _silu(conv)                                            # drop == identity

    # fused [lskip | q | k | i_gate | o_gate]: (N, H) @ (H, 5H)
    y = jnp.dot(left_left.astype(jnp.bfloat16), w_ll5[...],
                preferred_element_type=jnp.float32) + b_ll5[0, :]
    l_skip = y[:, 0 * H:1 * H]
    q = y[:, 1 * H:2 * H]
    k = y[:, 2 * H:3 * H]
    i_pre = y[:, 3 * H:4 * H]
    o_pre = y[:, 4 * H:5 * H]

    # v uses `left` (pre-conv), per the reference module
    v = jnp.dot(left.astype(jnp.bfloat16), w_v[...],
                preferred_element_type=jnp.float32) + b_v[0, :]

    i_g = jnp.exp(_layernorm(i_pre, ln1_g[0, :], ln1_b[0, :]))         # lni
    o_g = _sigmoid(_layernorm(o_pre, ln1_g[1, :], ln1_b[1, :]))        # lno

    # ct_1 = nt_1 = 0 on the first call -> f_gate * state vanishes (f skipped)
    ct_e = _layernorm(i_g * v * k, ln1_g[2, :], ln1_b[2, :])           # ln_c
    nt_e = _layernorm(i_g * k, ln1_g[3, :], ln1_b[3, :])               # ln_n

    # per-tile tensors needed after the global reduction
    inter_ref[0] = q
    inter_ref[1] = o_g
    inter_ref[2] = l_skip
    inter_ref[3] = right

    # per-batch partial reductions: sum(ct_e), sum(nt_e), max(q), min(q)
    stats_ref[...] = jnp.concatenate(
        [jnp.sum(ct_e, axis=0, keepdims=True),
         jnp.sum(nt_e, axis=0, keepdims=True),
         jnp.max(q, axis=0, keepdims=True),
         jnp.min(q, axis=0, keepdims=True)], axis=0)


# ------------------------ stage 2: per-batch finalization -----------------------

def stage2_kernel(inter_ref, ctq_ref, w_proj, b_proj, ln2_g, ln2_b, out_ref):
    # ln2 rows: 0=GN 1=ln_out 2=ln_proj
    q = inter_ref[0]
    o_g = inter_ref[1]
    l_skip = inter_ref[2]
    right = inter_ref[3]

    # ht = o * (ct * q / max(nt*q)); the scalar 1/denom is folded into ct
    ht = o_g * (ctq_ref[0, :] * q)
    left2 = _layernorm(ht + l_skip, ln2_g[0, :], ln2_b[0, :])          # GN (drop2 == id)
    out = _layernorm(left2 * right, ln2_g[1, :], ln2_b[1, :])          # ln_out
    out = jnp.dot(out.astype(jnp.bfloat16), w_proj[...],
                  preferred_element_type=jnp.float32) + b_proj[0, :]   # proj
    out_ref[...] = _layernorm(out, ln2_g[2, :], ln2_b[2, :])           # ln_proj


# -------------------- parameter construction (deterministic) --------------------

def init_params(key, D, H, num_blocks):
    def lin(k, fan_in, shape):
        bound = 1.0 / float(fan_in) ** 0.5
        return jax.random.uniform(k, shape, jnp.float32, -bound, bound)

    ks = jax.random.split(key, 24)
    bs = H // num_blocks
    bd_mask = jnp.kron(jnp.eye(num_blocks, dtype=jnp.float32),
                       jnp.ones((bs, bs), jnp.float32))                # (H, H)

    w_left, b_left = lin(ks[0], D, (D, H)), lin(ks[1], D, (1, H))
    w_right, b_right = lin(ks[2], D, (D, H)), lin(ks[3], D, (1, H))
    conv_w, conv_b = lin(ks[4], 3, (3, H)), lin(ks[5], 3, (1, H))
    w_lskip, b_lskip = lin(ks[6], H, (H, H)), lin(ks[7], H, (1, H))
    w_q, b_q = lin(ks[8], bs, (H, H)) * bd_mask, lin(ks[9], bs, (1, H))
    w_k, b_k = lin(ks[10], bs, (H, H)) * bd_mask, lin(ks[11], bs, (1, H))
    w_v, b_v = lin(ks[12], bs, (H, H)) * bd_mask, lin(ks[13], bs, (1, H))
    w_i, b_i = lin(ks[14], H, (H, H)), lin(ks[15], H, (1, H))
    w_o, b_o = lin(ks[16], H, (H, H)), lin(ks[17], H, (1, H))
    w_proj, b_proj = lin(ks[18], H, (H, H)), lin(ks[19], H, (1, H))
    # f_gate weights are omitted: they only ever multiply the zero initial state.

    p = {}
    p["ln_in_g"] = jnp.ones((1, D), jnp.float32)
    p["ln_in_b"] = jnp.zeros((1, D), jnp.float32)
    # fused left||right projection (MXU operands in bf16)
    p["w_lr"] = jnp.concatenate([w_left, w_right], axis=1).astype(jnp.bfloat16)
    p["b_lr"] = jnp.concatenate([b_left, b_right], axis=1)
    p["conv_w"], p["conv_b"] = conv_w, conv_b
    # fused [lskip | q | k | i_gate | o_gate] projection of left_left
    p["w_ll5"] = jnp.concatenate([w_lskip, w_q, w_k, w_i, w_o],
                                 axis=1).astype(jnp.bfloat16)
    p["b_ll5"] = jnp.concatenate([b_lskip, b_q, b_k, b_i, b_o], axis=1)
    p["w_v"] = w_v.astype(jnp.bfloat16)
    p["b_v"] = b_v
    p["w_proj"] = w_proj.astype(jnp.bfloat16)
    p["b_proj"] = b_proj
    # hidden-size LayerNorms. stage1 rows: 0=lni 1=lno 2=ln_c 3=ln_n
    p["ln1_g"] = jnp.ones((4, H), jnp.float32)
    p["ln1_b"] = jnp.zeros((4, H), jnp.float32)
    # stage2 rows: 0=GN 1=ln_out 2=ln_proj
    p["ln2_g"] = jnp.ones((3, H), jnp.float32)
    p["ln2_b"] = jnp.zeros((3, H), jnp.float32)
    return p


# ------------------------------- wrapper ---------------------------------------

def _resident_spec(arr):
    nd = arr.ndim
    return pl.BlockSpec(arr.shape, lambda b, _nd=nd: (0,) * _nd)


@functools.partial(jax.jit, static_argnums=(2,))
def mlstm_block(x, params, hidden_size):
    B, N, D = x.shape
    H = hidden_size
    p = params
    cparams = pltpu.CompilerParams(
        dimension_semantics=("parallel",),          # batch axis splits over TCs
        vmem_limit_bytes=48 * 1024 * 1024)          # > v5e 16MiB default, < v7x 64MiB

    # ---- stage 1: everything up to the global mean / max reductions ----
    s1_in = [x, p["ln_in_g"], p["ln_in_b"], p["w_lr"], p["b_lr"],
             p["conv_w"], p["conv_b"], p["w_ll5"], p["b_ll5"],
             p["w_v"], p["b_v"], p["ln1_g"], p["ln1_b"]]
    s1_specs = ([pl.BlockSpec((None, N, D), lambda b: (b, 0, 0))]
                + [_resident_spec(a) for a in s1_in[1:]])

    inter, stats = pl.pallas_call(
        functools.partial(stage1_kernel, N, H),
        grid=(B,),
        in_specs=s1_specs,
        out_specs=(pl.BlockSpec((None, 4, N, H), lambda b: (b, 0, 0, 0)),
                   pl.BlockSpec((None, 4, H), lambda b: (b, 0, 0))),
        out_shape=(jax.ShapeDtypeStruct((B, 4, N, H), jnp.float32),   # q,o,lskip,right
                   jax.ShapeDtypeStruct((B, 4, H), jnp.float32)),     # partial stats
        compiler_params=cparams,
    )(*s1_in)

    # ---- tiny cross-batch reduction glue ((B,4,H) -> (H,)) ----
    inv_bn = 1.0 / float(B * N)
    ct = jnp.sum(stats[:, 0, :], axis=0) * inv_bn      # mean(ln_c(i*v*k)) over (B,N)
    nt = jnp.sum(stats[:, 1, :], axis=0) * inv_bn      # mean(ln_n(i*k))   over (B,N)
    q_max = jnp.max(stats[:, 2, :], axis=0)
    q_min = jnp.min(stats[:, 3, :], axis=0)
    # max(nt * q) over (B,N,H) decomposed per channel via max/min of q
    denom = jnp.max(jnp.maximum(nt * q_max, nt * q_min))
    ct_over_denom = (ct / denom).reshape(1, H)

    # ---- stage 2: ht, GN, ln_out, proj, ln_proj ----
    s2_in = [inter, ct_over_denom, p["w_proj"], p["b_proj"],
             p["ln2_g"], p["ln2_b"]]
    s2_specs = ([pl.BlockSpec((None, 4, N, H), lambda b: (b, 0, 0, 0))]
                + [_resident_spec(a) for a in s2_in[1:]])

    out = pl.pallas_call(
        stage2_kernel,
        grid=(B,),
        in_specs=s2_specs,
        out_specs=pl.BlockSpec((None, N, H), lambda b: (b, 0, 0)),
        out_shape=jax.ShapeDtypeStruct((B, N, H), jnp.float32),
        compiler_params=cparams,
    )(*s2_in)
    return out, None


if __name__ == "__main__":
    B, N, D, H, NUM_LAYERS = 2, 8, 16, 32, 4

    key = jax.random.PRNGKey(0)
    kx, kp = jax.random.split(key)
    x = jax.random.normal(kx, (B, N, D), jnp.float32)
    params = init_params(kp, D, H, NUM_LAYERS)

    out, _ = mlstm_block(x, params, H)
    out = jax.block_until_ready(out)
    assert out.shape == (B, N, H) and out.dtype == jnp.float32
    assert bool(jnp.all(jnp.isfinite(out)))
    print("KERNEL_OK")
</pallas_src>

<mosaic_0001>
module attributes {stable_mosaic.version = 11 : i64} {
  func.func @stage1_kernel(%arg0: i32, %arg1: memref<1x8x16xf32, #tpu.memory_space<vmem>>, %arg2: memref<1x16xf32, #tpu.memory_space<vmem>>, %arg3: memref<1x16xf32, #tpu.memory_space<vmem>>, %arg4: memref<16x64xbf16, #tpu.memory_space<vmem>>, %arg5: memref<1x64xf32, #tpu.memory_space<vmem>>, %arg6: memref<3x32xf32, #tpu.memory_space<vmem>>, %arg7: memref<1x32xf32, #tpu.memory_space<vmem>>, %arg8: memref<32x160xbf16, #tpu.memory_space<vmem>>, %arg9: memref<1x160xf32, #tpu.memory_space<vmem>>, %arg10: memref<32x32xbf16, #tpu.memory_space<vmem>>, %arg11: memref<1x32xf32, #tpu.memory_space<vmem>>, %arg12: memref<4x32xf32, #tpu.memory_space<vmem>>, %arg13: memref<4x32xf32, #tpu.memory_space<vmem>>, %arg14: memref<1x4x8x32xf32, #tpu.memory_space<vmem>>, %arg15: memref<1x4x32xf32, #tpu.memory_space<vmem>>) attributes {dimension_semantics = [#tpu.dimension_semantics<parallel>], iteration_bounds = array<i64: 2>, scalar_prefetch = 0 : i64, scratch_operands = 0 : i64, tpu.core_type = #tpu.core_type<tc>, window_params = [{transform_indices = @transform_0, window_bounds = array<i64: 1, 8, 16>}, {pipeline_mode = #tpu.pipeline_mode<synchronous>, transform_indices = @transform_1, window_bounds = array<i64: 1, 16>}, {pipeline_mode = #tpu.pipeline_mode<synchronous>, transform_indices = @transform_2, window_bounds = array<i64: 1, 16>}, {pipeline_mode = #tpu.pipeline_mode<synchronous>, transform_indices = @transform_3, window_bounds = array<i64: 16, 64>}, {pipeline_mode = #tpu.pipeline_mode<synchronous>, transform_indices = @transform_4, window_bounds = array<i64: 1, 64>}, {pipeline_mode = #tpu.pipeline_mode<synchronous>, transform_indices = @transform_5, window_bounds = array<i64: 3, 32>}, {pipeline_mode = #tpu.pipeline_mode<synchronous>, transform_indices = @transform_6, window_bounds = array<i64: 1, 32>}, {pipeline_mode = #tpu.pipeline_mode<synchronous>, transform_indices = @transform_7, window_bounds = array<i64: 32, 160>}, {pipeline_mode = #tpu.pipeline_mode<synchronous>, transform_indices = @transform_8, window_bounds = array<i64: 1, 160>}, {pipeline_mode = #tpu.pipeline_mode<synchronous>, transform_indices = @transform_9, window_bounds = array<i64: 32, 32>}, {pipeline_mode = #tpu.pipeline_mode<synchronous>, transform_indices = @transform_10, window_bounds = array<i64: 1, 32>}, {pipeline_mode = #tpu.pipeline_mode<synchronous>, transform_indices = @transform_11, window_bounds = array<i64: 4, 32>}, {pipeline_mode = #tpu.pipeline_mode<synchronous>, transform_indices = @transform_12, window_bounds = array<i64: 4, 32>}, {transform_indices = @transform_13, window_bounds = array<i64: 1, 4, 8, 32>}, {transform_indices = @transform_14, window_bounds = array<i64: 1, 4, 32>}]} {
    %c0 = arith.constant 0 : index
    %c0_0 = arith.constant 0 : index
    %c0_1 = arith.constant 0 : index
    %0 = vector.load %arg1[%c0, %c0_0, %c0_1] : memref<1x8x16xf32, #tpu.memory_space<vmem>>, vector<1x8x16xf32>
    %1 = vector.shape_cast %0 : vector<1x8x16xf32> to vector<8x16xf32>
    %c0_2 = arith.constant 0 : index
    %c0_3 = arith.constant 0 : index
    %2 = vector.load %arg2[%c0_2, %c0_3] : memref<1x16xf32, #tpu.memory_space<vmem>>, vector<1x16xf32>
    %3 = vector.shape_cast %2 : vector<1x16xf32> to vector<16xf32>
    %c0_4 = arith.constant 0 : index
    %c0_5 = arith.constant 0 : index
    %4 = vector.load %arg3[%c0_4, %c0_5] : memref<1x16xf32, #tpu.memory_space<vmem>>, vector<1x16xf32>
    %5 = vector.shape_cast %4 : vector<1x16xf32> to vector<16xf32>
    %cst = arith.constant dense<0.000000e+00> : vector<8xf32>
    %6 = vector.multi_reduction <add>, %1, %cst [1] : vector<8x16xf32> to vector<8xf32>
    %7 = vector.shape_cast %6 : vector<8xf32> to vector<8x1xf32>
    %cst_6 = arith.constant 1.600000e+01 : f32
    %8 = vector.broadcast %cst_6 : f32 to vector<8x1xf32>
    %9 = arith.divf %7, %8 : vector<8x1xf32>
    %10 = vector.broadcast %9 : vector<8x1xf32> to vector<8x16xf32>
    %11 = arith.subf %1, %10 : vector<8x16xf32>
    %12 = arith.mulf %11, %11 : vector<8x16xf32>
    %cst_7 = arith.constant dense<0.000000e+00> : vector<8xf32>
    %13 = vector.multi_reduction <add>, %12, %cst_7 [1] : vector<8x16xf32> to vector<8xf32>
    %14 = vector.shape_cast %13 : vector<8xf32> to vector<8x1xf32>
    %cst_8 = arith.constant 1.600000e+01 : f32
    %15 = vector.broadcast %cst_8 : f32 to vector<8x1xf32>
    %16 = arith.divf %14, %15 : vector<8x1xf32>
    %17 = vector.broadcast %9 : vector<8x1xf32> to vector<8x16xf32>
    %18 = arith.subf %1, %17 : vector<8x16xf32>
    %cst_9 = arith.constant 9.99999974E-6 : f32
    %19 = vector.broadcast %cst_9 : f32 to vector<8x1xf32>
    %20 = arith.addf %16, %19 : vector<8x1xf32>
    %21 = math.rsqrt %20 : vector<8x1xf32>
    %22 = vector.broadcast %21 : vector<8x1xf32> to vector<8x16xf32>
    %23 = arith.mulf %18, %22 : vector<8x16xf32>
    %24 = vector.shape_cast %3 : vector<16xf32> to vector<1x16xf32>
    %25 = vector.broadcast %24 : vector<1x16xf32> to vector<8x16xf32>
    %26 = arith.mulf %23, %25 : vector<8x16xf32>
    %27 = vector.shape_cast %5 : vector<16xf32> to vector<1x16xf32>
    %28 = vector.broadcast %27 : vector<1x16xf32> to vector<8x16xf32>
    %29 = arith.addf %26, %28 : vector<8x16xf32>
    %30 = arith.truncf %29 : vector<8x16xf32> to vector<8x16xbf16>
    %c0_10 = arith.constant 0 : index
    %c0_11 = arith.constant 0 : index
    %31 = vector.load %arg4[%c0_10, %c0_11] : memref<16x64xbf16, #tpu.memory_space<vmem>>, vector<16x64xbf16>
    %cst_12 = arith.constant dense<0.000000e+00> : vector<8x64xf32>
    %32 = tpu.matmul %30, %31, %cst_12 {dimension_numbers = #tpu.dot_dimension_numbers<[1], [0], [0], [1], [0, 0, 1, 1], [], []>} : vector<8x16xbf16>, vector<16x64xbf16>, vector<8x64xf32> -> vector<8x64xf32>
    %c0_13 = arith.constant 0 : index
    %c0_14 = arith.constant 0 : index
    %33 = vector.load %arg5[%c0_13, %c0_14] : memref<1x64xf32, #tpu.memory_space<vmem>>, vector<1x64xf32>
    %34 = vector.shape_cast %33 : vector<1x64xf32> to vector<64xf32>
    %35 = vector.shape_cast %34 : vector<64xf32> to vector<1x64xf32>
    %36 = vector.broadcast %35 : vector<1x64xf32> to vector<8x64xf32>
    %37 = arith.addf %32, %36 : vector<8x64xf32>
    %38 = vector.extract_strided_slice %37 {offsets = [0, 0], sizes = [8, 32], strides = [1, 1]} : vector<8x64xf32> to vector<8x32xf32>
    %39 = vector.extract_strided_slice %37 {offsets = [0, 32], sizes = [8, 32], strides = [1, 1]} : vector<8x64xf32> to vector<8x32xf32>
    %cst_15 = arith.constant 5.000000e-01 : f32
    %40 = vector.broadcast %cst_15 : f32 to vector<8x32xf32>
    %41 = arith.mulf %40, %39 : vector<8x32xf32>
    %42 = math.tanh %41 : vector<8x32xf32>
    %cst_16 = arith.constant 1.000000e+00 : f32
    %43 = vector.broadcast %cst_16 : f32 to vector<8x32xf32>
    %44 = arith.addf %42, %43 : vector<8x32xf32>
    %cst_17 = arith.constant 5.000000e-01 : f32
    %45 = vector.broadcast %cst_17 : f32 to vector<8x32xf32>
    %46 = arith.mulf %45, %44 : vector<8x32xf32>
    %47 = arith.mulf %39, %46 : vector<8x32xf32>
    %48 = tpu.iota {dimensions = array<i32: 0>} : vector<8x32xi32>
    %c0_i32 = arith.constant 0 : i32
    %49 = vector.broadcast %c0_i32 : i32 to vector<8x32xi32>
    %50 = arith.cmpi eq, %48, %49 : vector<8x32xi32>
    %c1_i32 = arith.constant 1 : i32
    %51 = tpu.dynamic_rotate %38 by %c1_i32 dim 0 : vector<8x32xf32>, i32 -> vector<8x32xf32>
    %cst_18 = arith.constant 0.000000e+00 : f32
    %52 = vector.broadcast %cst_18 : f32 to vector<8x32xf32>
    %53 = arith.select %50, %52, %51 : vector<8x32xi1>, vector<8x32xf32>
    %c7_i32 = arith.constant 7 : i32
    %54 = vector.broadcast %c7_i32 : i32 to vector<8x32xi32>
    %55 = arith.cmpi eq, %48, %54 : vector<8x32xi32>
    %c7_i32_19 = arith.constant 7 : i32
    %56 = tpu.dynamic_rotate %38 by %c7_i32_19 dim 0 : vector<8x32xf32>, i32 -> vector<8x32xf32>
    %cst_20 = arith.constant 0.000000e+00 : f32
    %57 = vector.broadcast %cst_20 : f32 to vector<8x32xf32>
    %58 = arith.select %55, %57, %56 : vector<8x32xi1>, vector<8x32xf32>
    %c0_21 = arith.constant 0 : index
    %c0_22 = arith.constant 0 : index
    %59 = vector.load %arg6[%c0_21, %c0_22] : memref<3x32xf32, #tpu.memory_space<vmem>>, vector<1x32xf32>
    %60 = vector.shape_cast %59 : vector<1x32xf32> to vector<32xf32>
    %61 = vector.shape_cast %60 : vector<32xf32> to vector<1x32xf32>
    %62 = vector.broadcast %61 : vector<1x32xf32> to vector<8x32xf32>
    %63 = arith.mulf %53, %62 : vector<8x32xf32>
    %c1 = arith.constant 1 : index
    %c0_23 = arith.constant 0 : index
    %64 = vector.load %arg6[%c1, %c0_23] : memref<3x32xf32, #tpu.memory_space<vmem>>, vector<1x32xf32>
    %65 = vector.shape_cast %64 : vector<1x32xf32> to vector<32xf32>
    %66 = vector.shape_cast %65 : vector<32xf32> to vector<1x32xf32>
    %67 = vector.broadcast %66 : vector<1x32xf32> to vector<8x32xf32>
    %68 = arith.mulf %38, %67 : vector<8x32xf32>
    %69 = arith.addf %63, %68 : vector<8x32xf32>
    %c2 = arith.constant 2 : index
    %c0_24 = arith.constant 0 : index
    %70 = vector.load %arg6[%c2, %c0_24] : memref<3x32xf32, #tpu.memory_space<vmem>>, vector<1x32xf32>
    %71 = vector.shape_cast %70 : vector<1x32xf32> to vector<32xf32>
    %72 = vector.shape_cast %71 : vector<32xf32> to vector<1x32xf32>
    %73 = vector.broadcast %72 : vector<1x32xf32> to vector<8x32xf32>
    %74 = arith.mulf %58, %73 : vector<8x32xf32>
    %75 = arith.addf %69, %74 : vector<8x32xf32>
    %c0_25 = arith.constant 0 : index
    %c0_26 = arith.constant 0 : index
    %76 = vector.load %arg7[%c0_25, %c0_26] : memref<1x32xf32, #tpu.memory_space<vmem>>, vector<1x32xf32>
    %77 = vector.shape_cast %76 : vector<1x32xf32> to vector<32xf32>
    %78 = vector.shape_cast %77 : vector<32xf32> to vector<1x32xf32>
    %79 = vector.broadcast %78 : vector<1x32xf32> to vector<8x32xf32>
    %80 = arith.addf %75, %79 : vector<8x32xf32>
    %cst_27 = arith.constant 5.000000e-01 : f32
    %81 = vector.broadcast %cst_27 : f32 to vector<8x32xf32>
    %82 = arith.mulf %81, %80 : vector<8x32xf32>
    %83 = math.tanh %82 : vector<8x32xf32>
    %cst_28 = arith.constant 1.000000e+00 : f32
    %84 = vector.broadcast %cst_28 : f32 to vector<8x32xf32>
    %85 = arith.addf %83, %84 : vector<8x32xf32>
    %cst_29 = arith.constant 5.000000e-01 : f32
    %86 = vector.broadcast %cst_29 : f32 to vector<8x32xf32>
    %87 = arith.mulf %86, %85 : vector<8x32xf32>
    %88 = arith.mulf %80, %87 : vector<8x32xf32>
    %89 = arith.truncf %88 : vector<8x32xf32> to vector<8x32xbf16>
    %c0_30 = arith.constant 0 : index
    %c0_31 = arith.constant 0 : index
    %90 = vector.load %arg8[%c0_30, %c0_31] : memref<32x160xbf16, #tpu.memory_space<vmem>>, vector<32x160xbf16>
    %cst_32 = arith.constant dense<0.000000e+00> : vector<8x160xf32>
    %91 = tpu.matmul %89, %90, %cst_32 {dimension_numbers = #tpu.dot_dimension_numbers<[1], [0], [0], [1], [0, 0, 1, 1], [], []>} : vector<8x32xbf16>, vector<32x160xbf16>, vector<8x160xf32> -> vector<8x160xf32>
    %c0_33 = arith.constant 0 : index
    %c0_34 = arith.constant 0 : index
    %92 = vector.load %arg9[%c0_33, %c0_34] : memref<1x160xf32, #tpu.memory_space<vmem>>, vector<1x160xf32>
    %93 = vector.shape_cast %92 : vector<1x160xf32> to vector<160xf32>
    %94 = vector.shape_cast %93 : vector<160xf32> to vector<1x160xf32>
    %95 = vector.broadcast %94 : vector<1x160xf32> to vector<8x160xf32>
    %96 = arith.addf %91, %95 : vector<8x160xf32>
    %97 = vector.extract_strided_slice %96 {offsets = [0, 0], sizes = [8, 32], strides = [1, 1]} : vector<8x160xf32> to vector<8x32xf32>
    %98 = vector.extract_strided_slice %96 {offsets = [0, 32], sizes = [8, 32], strides = [1, 1]} : vector<8x160xf32> to vector<8x32xf32>
    %99 = vector.extract_strided_slice %96 {offsets = [0, 64], sizes = [8, 32], strides = [1, 1]} : vector<8x160xf32> to vector<8x32xf32>
    %100 = vector.extract_strided_slice %96 {offsets = [0, 96], sizes = [8, 32], strides = [1, 1]} : vector<8x160xf32> to vector<8x32xf32>
    %101 = vector.extract_strided_slice %96 {offsets = [0, 128], sizes = [8, 32], strides = [1, 1]} : vector<8x160xf32> to vector<8x32xf32>
    %102 = arith.truncf %38 : vector<8x32xf32> to vector<8x32xbf16>
    %c0_35 = arith.constant 0 : index
    %c0_36 = arith.constant 0 : index
    %103 = vector.load %arg10[%c0_35, %c0_36] : memref<32x32xbf16, #tpu.memory_space<vmem>>, vector<32x32xbf16>
    %cst_37 = arith.constant dense<0.000000e+00> : vector<8x32xf32>
    %104 = tpu.matmul %102, %103, %cst_37 {dimension_numbers = #tpu.dot_dimension_numbers<[1], [0], [0], [1], [0, 0, 1, 1], [], []>} : vector<8x32xbf16>, vector<32x32xbf16>, vector<8x32xf32> -> vector<8x32xf32>
    %c0_38 = arith.constant 0 : index
    %c0_39 = arith.constant 0 : index
    %105 = vector.load %arg11[%c0_38, %c0_39] : memref<1x32xf32, #tpu.memory_space<vmem>>, vector<1x32xf32>
    %106 = vector.shape_cast %105 : vector<1x32xf32> to vector<32xf32>
    %107 = vector.shape_cast %106 : vector<32xf32> to vector<1x32xf32>
    %108 = vector.broadcast %107 : vector<1x32xf32> to vector<8x32xf32>
    %109 = arith.addf %104, %108 : vector<8x32xf32>
    %c0_40 = arith.constant 0 : index
    %c0_41 = arith.constant 0 : index
    %110 = vector.load %arg12[%c0_40, %c0_41] : memref<4x32xf32, #tpu.memory_space<vmem>>, vector<1x32xf32>
    %111 = vector.shape_cast %110 : vector<1x32xf32> to vector<32xf32>
    %c0_42 = arith.constant 0 : index
    %c0_43 = arith.constant 0 : index
    %112 = vector.load %arg13[%c0_42, %c0_43] : memref<4x32xf32, #tpu.memory_space<vmem>>, vector<1x32xf32>
    %113 = vector.shape_cast %112 : vector<1x32xf32> to vector<32xf32>
    %cst_44 = arith.constant dense<0.000000e+00> : vector<8xf32>
    %114 = vector.multi_reduction <add>, %100, %cst_44 [1] : vector<8x32xf32> to vector<8xf32>
    %115 = vector.shape_cast %114 : vector<8xf32> to vector<8x1xf32>
    %cst_45 = arith.constant 3.200000e+01 : f32
    %116 = vector.broadcast %cst_45 : f32 to vector<8x1xf32>
    %117 = arith.divf %115, %116 : vector<8x1xf32>
    %118 = vector.broadcast %117 : vector<8x1xf32> to vector<8x32xf32>
    %119 = arith.subf %100, %118 : vector<8x32xf32>
    %120 = arith.mulf %119, %119 : vector<8x32xf32>
    %cst_46 = arith.constant dense<0.000000e+00> : vector<8xf32>
    %121 = vector.multi_reduction <add>, %120, %cst_46 [1] : vector<8x32xf32> to vector<8xf32>
    %122 = vector.shape_cast %121 : vector<8xf32> to vector<8x1xf32>
    %cst_47 = arith.constant 3.200000e+01 : f32
    %123 = vector.broadcast %cst_47 : f32 to vector<8x1xf32>
    %124 = arith.divf %122, %123 : vector<8x1xf32>
    %125 = vector.broadcast %117 : vector<8x1xf32> to vector<8x32xf32>
    %126 = arith.subf %100, %125 : vector<8x32xf32>
    %cst_48 = arith.constant 9.99999974E-6 : f32
    %127 = vector.broadcast %cst_48 : f32 to vector<8x1xf32>
    %128 = arith.addf %124, %127 : vector<8x1xf32>
    %129 = math.rsqrt %128 : vector<8x1xf32>
    %130 = vector.broadcast %129 : vector<8x1xf32> to vector<8x32xf32>
    %131 = arith.mulf %126, %130 : vector<8x32xf32>
    %132 = vector.shape_cast %111 : vector<32xf32> to vector<1x32xf32>
    %133 = vector.broadcast %132 : vector<1x32xf32> to vector<8x32xf32>
    %134 = arith.mulf %131, %133 : vector<8x32xf32>
    %135 = vector.shape_cast %113 : vector<32xf32> to vector<1x32xf32>
    %136 = vector.broadcast %135 : vector<1x32xf32> to vector<8x32xf32>
    %137 = arith.addf %134, %136 : vector<8x32xf32>
    %138 = math.exp %137 : vector<8x32xf32>
    %c1_49 = arith.constant 1 : index
    %c0_50 = arith.constant 0 : index
    %139 = vector.load %arg12[%c1_49, %c0_50] : memref<4x32xf32, #tpu.memory_space<vmem>>, vector<1x32xf32>
    %140 = vector.shape_cast %139 : vector<1x32xf32> to vector<32xf32>
    %c1_51 = arith.constant 1 : index
    %c0_52 = arith.constant 0 : index
    %141 = vector.load %arg13[%c1_51, %c0_52] : memref<4x32xf32, #tpu.memory_space<vmem>>, vector<1x32xf32>
    %142 = vector.shape_cast %141 : vector<1x32xf32> to vector<32xf32>
    %cst_53 = arith.constant dense<0.000000e+00> : vector<8xf32>
    %143 = vector.multi_reduction <add>, %101, %cst_53 [1] : vector<8x32xf32> to vector<8xf32>
    %144 = vector.shape_cast %143 : vector<8xf32> to vector<8x1xf32>
    %cst_54 = arith.constant 3.200000e+01 : f32
    %145 = vector.broadcast %cst_54 : f32 to vector<8x1xf32>
    %146 = arith.divf %144, %145 : vector<8x1xf32>
    %147 = vector.broadcast %146 : vector<8x1xf32> to vector<8x32xf32>
    %148 = arith.subf %101, %147 : vector<8x32xf32>
    %149 = arith.mulf %148, %148 : vector<8x32xf32>
    %cst_55 = arith.constant dense<0.000000e+00> : vector<8xf32>
    %150 = vector.multi_reduction <add>, %149, %cst_55 [1] : vector<8x32xf32> to vector<8xf32>
    %151 = vector.shape_cast %150 : vector<8xf32> to vector<8x1xf32>
    %cst_56 = arith.constant 3.200000e+01 : f32
    %152 = vector.broadcast %cst_56 : f32 to vector<8x1xf32>
    %153 = arith.divf %151, %152 : vector<8x1xf32>
    %154 = vector.broadcast %146 : vector<8x1xf32> to vector<8x32xf32>
    %155 = arith.subf %101, %154 : vector<8x32xf32>
    %cst_57 = arith.constant 9.99999974E-6 : f32
    %156 = vector.broadcast %cst_57 : f32 to vector<8x1xf32>
    %157 = arith.addf %153, %156 : vector<8x1xf32>
    %158 = math.rsqrt %157 : vector<8x1xf32>
    %159 = vector.broadcast %158 : vector<8x1xf32> to vector<8x32xf32>
    %160 = arith.mulf %155, %159 : vector<8x32xf32>
    %161 = vector.shape_cast %140 : vector<32xf32> to vector<1x32xf32>
    %162 = vector.broadcast %161 : vector<1x32xf32> to vector<8x32xf32>
    %163 = arith.mulf %160, %162 : vector<8x32xf32>
    %164 = vector.shape_cast %142 : vector<32xf32> to vector<1x32xf32>
    %165 = vector.broadcast %164 : vector<1x32xf32> to vector<8x32xf32>
    %166 = arith.addf %163, %165 : vector<8x32xf32>
    %cst_58 = arith.constant 5.000000e-01 : f32
    %167 = vector.broadcast %cst_58 : f32 to vector<8x32xf32>
    %168 = arith.mulf %167, %166 : vector<8x32xf32>
    %169 = math.tanh %168 : vector<8x32xf32>
    %cst_59 = arith.constant 1.000000e+00 : f32
    %170 = vector.broadcast %cst_59 : f32 to vector<8x32xf32>
    %171 = arith.addf %169, %170 : vector<8x32xf32>
    %cst_60 = arith.constant 5.000000e-01 : f32
    %172 = vector.broadcast %cst_60 : f32 to vector<8x32xf32>
    %173 = arith.mulf %172, %171 : vector<8x32xf32>
    %174 = arith.mulf %138, %109 : vector<8x32xf32>
    %175 = arith.mulf %174, %99 : vector<8x32xf32>
    %c2_61 = arith.constant 2 : index
    %c0_62 = arith.constant 0 : index
    %176 = vector.load %arg12[%c2_61, %c0_62] : memref<4x32xf32, #tpu.memory_space<vmem>>, vector<1x32xf32>
    %177 = vector.shape_cast %176 : vector<1x32xf32> to vector<32xf32>
    %c2_63 = arith.constant 2 : index
    %c0_64 = arith.constant 0 : index
    %178 = vector.load %arg13[%c2_63, %c0_64] : memref<4x32xf32, #tpu.memory_space<vmem>>, vector<1x32xf32>
    %179 = vector.shape_cast %178 : vector<1x32xf32> to vector<32xf32>
    %cst_65 = arith.constant dense<0.000000e+00> : vector<8xf32>
    %180 = vector.multi_reduction <add>, %175, %cst_65 [1] : vector<8x32xf32> to vector<8xf32>
    %181 = vector.shape_cast %180 : vector<8xf32> to vector<8x1xf32>
    %cst_66 = arith.constant 3.200000e+01 : f32
    %182 = vector.broadcast %cst_66 : f32 to vector<8x1xf32>
    %183 = arith.divf %181, %182 : vector<8x1xf32>
    %184 = vector.broadcast %183 : vector<8x1xf32> to vector<8x32xf32>
    %185 = arith.subf %175, %184 : vector<8x32xf32>
    %186 = arith.mulf %185, %185 : vector<8x32xf32>
    %cst_67 = arith.constant dense<0.000000e+00> : vector<8xf32>
    %187 = vector.multi_reduction <add>, %186, %cst_67 [1] : vector<8x32xf32> to vector<8xf32>
    %188 = vector.shape_cast %187 : vector<8xf32> to vector<8x1xf32>
    %cst_68 = arith.constant 3.200000e+01 : f32
    %189 = vector.broadcast %cst_68 : f32 to vector<8x1xf32>
    %190 = arith.divf %188, %189 : vector<8x1xf32>
    %191 = vector.broadcast %183 : vector<8x1xf32> to vector<8x32xf32>
    %192 = arith.subf %175, %191 : vector<8x32xf32>
    %cst_69 = arith.constant 9.99999974E-6 : f32
    %193 = vector.broadcast %cst_69 : f32 to vector<8x1xf32>
    %194 = arith.addf %190, %193 : vector<8x1xf32>
    %195 = math.rsqrt %194 : vector<8x1xf32>
    %196 = vector.broadcast %195 : vector<8x1xf32> to vector<8x32xf32>
    %197 = arith.mulf %192, %196 : vector<8x32xf32>
    %198 = vector.shape_cast %177 : vector<32xf32> to vector<1x32xf32>
    %199 = vector.broadcast %198 : vector<1x32xf32> to vector<8x32xf32>
    %200 = arith.mulf %197, %199 : vector<8x32xf32>
    %201 = vector.shape_cast %179 : vector<32xf32> to vector<1x32xf32>
    %202 = vector.broadcast %201 : vector<1x32xf32> to vector<8x32xf32>
    %203 = arith.addf %200, %202 : vector<8x32xf32>
    %204 = arith.mulf %138, %99 : vector<8x32xf32>
    %c3 = arith.constant 3 : index
    %c0_70 = arith.constant 0 : index
    %205 = vector.load %arg12[%c3, %c0_70] : memref<4x32xf32, #tpu.memory_space<vmem>>, vector<1x32xf32>
    %206 = vector.shape_cast %205 : vector<1x32xf32> to vector<32xf32>
    %c3_71 = arith.constant 3 : index
    %c0_72 = arith.constant 0 : index
    %207 = vector.load %arg13[%c3_71, %c0_72] : memref<4x32xf32, #tpu.memory_space<vmem>>, vector<1x32xf32>
    %208 = vector.shape_cast %207 : vector<1x32xf32> to vector<32xf32>
    %cst_73 = arith.constant dense<0.000000e+00> : vector<8xf32>
    %209 = vector.multi_reduction <add>, %204, %cst_73 [1] : vector<8x32xf32> to vector<8xf32>
    %210 = vector.shape_cast %209 : vector<8xf32> to vector<8x1xf32>
    %cst_74 = arith.constant 3.200000e+01 : f32
    %211 = vector.broadcast %cst_74 : f32 to vector<8x1xf32>
    %212 = arith.divf %210, %211 : vector<8x1xf32>
    %213 = vector.broadcast %212 : vector<8x1xf32> to vector<8x32xf32>
    %214 = arith.subf %204, %213 : vector<8x32xf32>
    %215 = arith.mulf %214, %214 : vector<8x32xf32>
    %cst_75 = arith.constant dense<0.000000e+00> : vector<8xf32>
    %216 = vector.multi_reduction <add>, %215, %cst_75 [1] : vector<8x32xf32> to vector<8xf32>
    %217 = vector.shape_cast %216 : vector<8xf32> to vector<8x1xf32>
    %cst_76 = arith.constant 3.200000e+01 : f32
    %218 = vector.broadcast %cst_76 : f32 to vector<8x1xf32>
    %219 = arith.divf %217, %218 : vector<8x1xf32>
    %220 = vector.broadcast %212 : vector<8x1xf32> to vector<8x32xf32>
    %221 = arith.subf %204, %220 : vector<8x32xf32>
    %cst_77 = arith.constant 9.99999974E-6 : f32
    %222 = vector.broadcast %cst_77 : f32 to vector<8x1xf32>
    %223 = arith.addf %219, %222 : vector<8x1xf32>
    %224 = math.rsqrt %223 : vector<8x1xf32>
    %225 = vector.broadcast %224 : vector<8x1xf32> to vector<8x32xf32>
    %226 = arith.mulf %221, %225 : vector<8x32xf32>
    %227 = vector.shape_cast %206 : vector<32xf32> to vector<1x32xf32>
    %228 = vector.broadcast %227 : vector<1x32xf32> to vector<8x32xf32>
    %229 = arith.mulf %226, %228 : vector<8x32xf32>
    %230 = vector.shape_cast %208 : vector<32xf32> to vector<1x32xf32>
    %231 = vector.broadcast %230 : vector<1x32xf32> to vector<8x32xf32>
    %232 = arith.addf %229, %231 : vector<8x32xf32>
    %c0_78 = arith.constant 0 : index
    %c0_79 = arith.constant 0 : index
    %c0_80 = arith.constant 0 : index
    %c0_81 = arith.constant 0 : index
    %233 = vector.load %arg14[%c0_78, %c0_79, %c0_80, %c0_81] : memref<1x4x8x32xf32, #tpu.memory_space<vmem>>, vector<1x1x8x32xf32>
    %234 = vector.shape_cast %233 : vector<1x1x8x32xf32> to vector<8x32xf32>
    %235 = vector.shape_cast %98 : vector<8x32xf32> to vector<1x1x8x32xf32>
    tpu.vector_store %arg14[%c0_78, %c0_79, %c0_80, %c0_81], %235 {strides = array<i32>} : memref<1x4x8x32xf32, #tpu.memory_space<vmem>>, vector<1x1x8x32xf32>,
    %c0_82 = arith.constant 0 : index
    %c1_83 = arith.constant 1 : index
    %c0_84 = arith.constant 0 : index
    %c0_85 = arith.constant 0 : index
    %236 = vector.load %arg14[%c0_82, %c1_83, %c0_84, %c0_85] : memref<1x4x8x32xf32, #tpu.memory_space<vmem>>, vector<1x1x8x32xf32>
    %237 = vector.shape_cast %236 : vector<1x1x8x32xf32> to vector<8x32xf32>
    %238 = vector.shape_cast %173 : vector<8x32xf32> to vector<1x1x8x32xf32>
    tpu.vector_store %arg14[%c0_82, %c1_83, %c0_84, %c0_85], %238 {strides = array<i32>} : memref<1x4x8x32xf32, #tpu.memory_space<vmem>>, vector<1x1x8x32xf32>,
    %c0_86 = arith.constant 0 : index
    %c2_87 = arith.constant 2 : index
    %c0_88 = arith.constant 0 : index
    %c0_89 = arith.constant 0 : index
    %239 = vector.load %arg14[%c0_86, %c2_87, %c0_88, %c0_89] : memref<1x4x8x32xf32, #tpu.memory_space<vmem>>, vector<1x1x8x32xf32>
    %240 = vector.shape_cast %239 : vector<1x1x8x32xf32> to vector<8x32xf32>
    %241 = vector.shape_cast %97 : vector<8x32xf32> to vector<1x1x8x32xf32>
    tpu.vector_store %arg14[%c0_86, %c2_87, %c0_88, %c0_89], %241 {strides = array<i32>} : memref<1x4x8x32xf32, #tpu.memory_space<vmem>>, vector<1x1x8x32xf32>,
    %c0_90 = arith.constant 0 : index
    %c3_91 = arith.constant 3 : index
    %c0_92 = arith.constant 0 : index
    %c0_93 = arith.constant 0 : index
    %242 = vector.load %arg14[%c0_90, %c3_91, %c0_92, %c0_93] : memref<1x4x8x32xf32, #tpu.memory_space<vmem>>, vector<1x1x8x32xf32>
    %243 = vector.shape_cast %242 : vector<1x1x8x32xf32> to vector<8x32xf32>
    %244 = vector.shape_cast %47 : vector<8x32xf32> to vector<1x1x8x32xf32>
    tpu.vector_store %arg14[%c0_90, %c3_91, %c0_92, %c0_93], %244 {strides = array<i32>} : memref<1x4x8x32xf32, #tpu.memory_space<vmem>>, vector<1x1x8x32xf32>,
    %cst_94 = arith.constant dense<0.000000e+00> : vector<32xf32>
    %245 = vector.multi_reduction <add>, %203, %cst_94 [0] : vector<8x32xf32> to vector<32xf32>
    %246 = vector.shape_cast %245 : vector<32xf32> to vector<1x32xf32>
    %cst_95 = arith.constant dense<0.000000e+00> : vector<32xf32>
    %247 = vector.multi_reduction <add>, %232, %cst_95 [0] : vector<8x32xf32> to vector<32xf32>
    %248 = vector.shape_cast %247 : vector<32xf32> to vector<1x32xf32>
    %cst_96 = arith.constant dense<0xFF800000> : vector<32xf32>
    %249 = vector.multi_reduction <maximumf>, %98, %cst_96 [0] : vector<8x32xf32> to vector<32xf32>
    %250 = vector.shape_cast %249 : vector<32xf32> to vector<1x32xf32>
    %cst_97 = arith.constant dense<0x7F800000> : vector<32xf32>
    %251 = vector.multi_reduction <minimumf>, %98, %cst_97 [0] : vector<8x32xf32> to vector<32xf32>
    %252 = vector.shape_cast %251 : vector<32xf32> to vector<1x32xf32>
    %253 = tpu.concatenate %246, %248, %250, %252 in 0 : vector<1x32xf32>, vector<1x32xf32>, vector<1x32xf32>, vector<1x32xf32> -> vector<4x32xf32>
    %c0_98 = arith.constant 0 : index
    %c0_99 = arith.constant 0 : index
    %c0_100 = arith.constant 0 : index
    %254 = vector.load %arg15[%c0_98, %c0_99, %c0_100] : memref<1x4x32xf32, #tpu.memory_space<vmem>>, vector<1x4x32xf32>
    %255 = vector.shape_cast %254 : vector<1x4x32xf32> to vector<4x32xf32>
    %256 = vector.shape_cast %253 : vector<4x32xf32> to vector<1x4x32xf32>
    tpu.vector_store %arg15[%c0_98, %c0_99, %c0_100], %256 {strides = array<i32>} : memref<1x4x32xf32, #tpu.memory_space<vmem>>, vector<1x4x32xf32>,
    return
  }
  func.func @transform_0(%arg0: i32) -> (i32, i32, i32) {
    %c0_i32 = arith.constant 0 : i32
    %c0_i32_0 = arith.constant 0 : i32
    %c0_i32_1 = arith.constant 0 : i32
    return %arg0, %c0_i32, %c0_i32_0 : i32, i32, i32
  }
  func.func @transform_1(%arg0: i32) -> (i32, i32) {
    %c0_i32 = arith.constant 0 : i32
    %c0_i32_0 = arith.constant 0 : i32
    %c0_i32_1 = arith.constant 0 : i32
    return %c0_i32, %c0_i32_0 : i32, i32
  }
  func.func @transform_2(%arg0: i32) -> (i32, i32) {
    %c0_i32 = arith.constant 0 : i32
    %c0_i32_0 = arith.constant 0 : i32
    %c0_i32_1 = arith.constant 0 : i32
    return %c0_i32, %c0_i32_0 : i32, i32
  }
  func.func @transform_3(%arg0: i32) -> (i32, i32) {
    %c0_i32 = arith.constant 0 : i32
    %c0_i32_0 = arith.constant 0 : i32
    %c0_i32_1 = arith.constant 0 : i32
    return %c0_i32, %c0_i32_0 : i32, i32
  }
  func.func @transform_4(%arg0: i32) -> (i32, i32) {
    %c0_i32 = arith.constant 0 : i32
    %c0_i32_0 = arith.constant 0 : i32
    %c0_i32_1 = arith.constant 0 : i32
    return %c0_i32, %c0_i32_0 : i32, i32
  }
  func.func @transform_5(%arg0: i32) -> (i32, i32) {
    %c0_i32 = arith.constant 0 : i32
    %c0_i32_0 = arith.constant 0 : i32
    %c0_i32_1 = arith.constant 0 : i32
    return %c0_i32, %c0_i32_0 : i32, i32
  }
  func.func @transform_6(%arg0: i32) -> (i32, i32) {
    %c0_i32 = arith.constant 0 : i32
    %c0_i32_0 = arith.constant 0 : i32
    %c0_i32_1 = arith.constant 0 : i32
    return %c0_i32, %c0_i32_0 : i32, i32
  }
  func.func @transform_7(%arg0: i32) -> (i32, i32) {
    %c0_i32 = arith.constant 0 : i32
    %c0_i32_0 = arith.constant 0 : i32
    %c0_i32_1 = arith.constant 0 : i32
    return %c0_i32, %c0_i32_0 : i32, i32
  }
  func.func @transform_8(%arg0: i32) -> (i32, i32) {
    %c0_i32 = arith.constant 0 : i32
    %c0_i32_0 = arith.constant 0 : i32
    %c0_i32_1 = arith.constant 0 : i32
    return %c0_i32, %c0_i32_0 : i32, i32
  }
  func.func @transform_9(%arg0: i32) -> (i32, i32) {
    %c0_i32 = arith.constant 0 : i32
    %c0_i32_0 = arith.constant 0 : i32
    %c0_i32_1 = arith.constant 0 : i32
    return %c0_i32, %c0_i32_0 : i32, i32
  }
  func.func @transform_10(%arg0: i32) -> (i32, i32) {
    %c0_i32 = arith.constant 0 : i32
    %c0_i32_0 = arith.constant 0 : i32
    %c0_i32_1 = arith.constant 0 : i32
    return %c0_i32, %c0_i32_0 : i32, i32
  }
  func.func @transform_11(%arg0: i32) -> (i32, i32) {
    %c0_i32 = arith.constant 0 : i32
    %c0_i32_0 = arith.constant 0 : i32
    %c0_i32_1 = arith.constant 0 : i32
    return %c0_i32, %c0_i32_0 : i32, i32
  }
  func.func @transform_12(%arg0: i32) -> (i32, i32) {
    %c0_i32 = arith.constant 0 : i32
    %c0_i32_0 = arith.constant 0 : i32
    %c0_i32_1 = arith.constant 0 : i32
    return %c0_i32, %c0_i32_0 : i32, i32
  }
  func.func @transform_13(%arg0: i32) -> (i32, i32, i32, i32) {
    %c0_i32 = arith.constant 0 : i32
    %c0_i32_0 = arith.constant 0 : i32
    %c0_i32_1 = arith.constant 0 : i32
    %c0_i32_2 = arith.constant 0 : i32
    return %arg0, %c0_i32, %c0_i32_0, %c0_i32_1 : i32, i32, i32, i32
  }
  func.func @transform_14(%arg0: i32) -> (i32, i32, i32) {
    %c0_i32 = arith.constant 0 : i32
    %c0_i32_0 = arith.constant 0 : i32
    %c0_i32_1 = arith.constant 0 : i32
    return %arg0, %c0_i32, %c0_i32_0 : i32, i32, i32
  }
}

module attributes {stable_mosaic.version = 11 : i64} {
  func.func @stage2_kernel(%arg0: i32, %arg1: memref<1x4x8x32xf32, #tpu.memory_space<vmem>>, %arg2: memref<1x32xf32, #tpu.memory_space<vmem>>, %arg3: memref<32x32xbf16, #tpu.memory_space<vmem>>, %arg4: memref<1x32xf32, #tpu.memory_space<vmem>>, %arg5: memref<3x32xf32, #tpu.memory_space<vmem>>, %arg6: memref<3x32xf32, #tpu.memory_space<vmem>>, %arg7: memref<1x8x32xf32, #tpu.memory_space<vmem>>) attributes {dimension_semantics = [#tpu.dimension_semantics<parallel>], iteration_bounds = array<i64: 2>, scalar_prefetch = 0 : i64, scratch_operands = 0 : i64, tpu.core_type = #tpu.core_type<tc>, window_params = [{transform_indices = @transform_0, window_bounds = array<i64: 1, 4, 8, 32>}, {pipeline_mode = #tpu.pipeline_mode<synchronous>, transform_indices = @transform_1, window_bounds = array<i64: 1, 32>}, {pipeline_mode = #tpu.pipeline_mode<synchronous>, transform_indices = @transform_2, window_bounds = array<i64: 32, 32>}, {pipeline_mode = #tpu.pipeline_mode<synchronous>, transform_indices = @transform_3, window_bounds = array<i64: 1, 32>}, {pipeline_mode = #tpu.pipeline_mode<synchronous>, transform_indices = @transform_4, window_bounds = array<i64: 3, 32>}, {pipeline_mode = #tpu.pipeline_mode<synchronous>, transform_indices = @transform_5, window_bounds = array<i64: 3, 32>}, {transform_indices = @transform_6, window_bounds = array<i64: 1, 8, 32>}]} {
    %c0 = arith.constant 0 : index
    %c0_0 = arith.constant 0 : index
    %c0_1 = arith.constant 0 : index
    %c0_2 = arith.constant 0 : index
    %0 = vector.load %arg1[%c0, %c0_0, %c0_1, %c0_2] : memref<1x4x8x32xf32, #tpu.memory_space<vmem>>, vector<1x1x8x32xf32>
    %1 = vector.shape_cast %0 : vector<1x1x8x32xf32> to vector<8x32xf32>
    %c0_3 = arith.constant 0 : index
    %c1 = arith.constant 1 : index
    %c0_4 = arith.constant 0 : index
    %c0_5 = arith.constant 0 : index
    %2 = vector.load %arg1[%c0_3, %c1, %c0_4, %c0_5] : memref<1x4x8x32xf32, #tpu.memory_space<vmem>>, vector<1x1x8x32xf32>
    %3 = vector.shape_cast %2 : vector<1x1x8x32xf32> to vector<8x32xf32>
    %c0_6 = arith.constant 0 : index
    %c2 = arith.constant 2 : index
    %c0_7 = arith.constant 0 : index
    %c0_8 = arith.constant 0 : index
    %4 = vector.load %arg1[%c0_6, %c2, %c0_7, %c0_8] : memref<1x4x8x32xf32, #tpu.memory_space<vmem>>, vector<1x1x8x32xf32>
    %5 = vector.shape_cast %4 : vector<1x1x8x32xf32> to vector<8x32xf32>
    %c0_9 = arith.constant 0 : index
    %c3 = arith.constant 3 : index
    %c0_10 = arith.constant 0 : index
    %c0_11 = arith.constant 0 : index
    %6 = vector.load %arg1[%c0_9, %c3, %c0_10, %c0_11] : memref<1x4x8x32xf32, #tpu.memory_space<vmem>>, vector<1x1x8x32xf32>
    %7 = vector.shape_cast %6 : vector<1x1x8x32xf32> to vector<8x32xf32>
    %c0_12 = arith.constant 0 : index
    %c0_13 = arith.constant 0 : index
    %8 = vector.load %arg2[%c0_12, %c0_13] : memref<1x32xf32, #tpu.memory_space<vmem>>, vector<1x32xf32>
    %9 = vector.shape_cast %8 : vector<1x32xf32> to vector<32xf32>
    %10 = vector.shape_cast %9 : vector<32xf32> to vector<1x32xf32>
    %11 = vector.broadcast %10 : vector<1x32xf32> to vector<8x32xf32>
    %12 = arith.mulf %11, %1 : vector<8x32xf32>
    %13 = arith.mulf %3, %12 : vector<8x32xf32>
    %14 = arith.addf %13, %5 : vector<8x32xf32>
    %c0_14 = arith.constant 0 : index
    %c0_15 = arith.constant 0 : index
    %15 = vector.load %arg5[%c0_14, %c0_15] : memref<3x32xf32, #tpu.memory_space<vmem>>, vector<1x32xf32>
    %16 = vector.shape_cast %15 : vector<1x32xf32> to vector<32xf32>
    %c0_16 = arith.constant 0 : index
    %c0_17 = arith.constant 0 : index
    %17 = vector.load %arg6[%c0_16, %c0_17] : memref<3x32xf32, #tpu.memory_space<vmem>>, vector<1x32xf32>
    %18 = vector.shape_cast %17 : vector<1x32xf32> to vector<32xf32>
    %cst = arith.constant dense<0.000000e+00> : vector<8xf32>
    %19 = vector.multi_reduction <add>, %14, %cst [1] : vector<8x32xf32> to vector<8xf32>
    %20 = vector.shape_cast %19 : vector<8xf32> to vector<8x1xf32>
    %cst_18 = arith.constant 3.200000e+01 : f32
    %21 = vector.broadcast %cst_18 : f32 to vector<8x1xf32>
    %22 = arith.divf %20, %21 : vector<8x1xf32>
    %23 = vector.broadcast %22 : vector<8x1xf32> to vector<8x32xf32>
    %24 = arith.subf %14, %23 : vector<8x32xf32>
    %25 = arith.mulf %24, %24 : vector<8x32xf32>
    %cst_19 = arith.constant dense<0.000000e+00> : vector<8xf32>
    %26 = vector.multi_reduction <add>, %25, %cst_19 [1] : vector<8x32xf32> to vector<8xf32>
    %27 = vector.shape_cast %26 : vector<8xf32> to vector<8x1xf32>
    %cst_20 = arith.constant 3.200000e+01 : f32
    %28 = vector.broadcast %cst_20 : f32 to vector<8x1xf32>
    %29 = arith.divf %27, %28 : vector<8x1xf32>
    %30 = vector.broadcast %22 : vector<8x1xf32> to vector<8x32xf32>
    %31 = arith.subf %14, %30 : vector<8x32xf32>
    %cst_21 = arith.constant 9.99999974E-6 : f32
    %32 = vector.broadcast %cst_21 : f32 to vector<8x1xf32>
    %33 = arith.addf %29, %32 : vector<8x1xf32>
    %34 = math.rsqrt %33 : vector<8x1xf32>
    %35 = vector.broadcast %34 : vector<8x1xf32> to vector<8x32xf32>
    %36 = arith.mulf %31, %35 : vector<8x32xf32>
    %37 = vector.shape_cast %16 : vector<32xf32> to vector<1x32xf32>
    %38 = vector.broadcast %37 : vector<1x32xf32> to vector<8x32xf32>
    %39 = arith.mulf %36, %38 : vector<8x32xf32>
    %40 = vector.shape_cast %18 : vector<32xf32> to vector<1x32xf32>
    %41 = vector.broadcast %40 : vector<1x32xf32> to vector<8x32xf32>
    %42 = arith.addf %39, %41 : vector<8x32xf32>
    %43 = arith.mulf %42, %7 : vector<8x32xf32>
    %c1_22 = arith.constant 1 : index
    %c0_23 = arith.constant 0 : index
    %44 = vector.load %arg5[%c1_22, %c0_23] : memref<3x32xf32, #tpu.memory_space<vmem>>, vector<1x32xf32>
    %45 = vector.shape_cast %44 : vector<1x32xf32> to vector<32xf32>
    %c1_24 = arith.constant 1 : index
    %c0_25 = arith.constant 0 : index
    %46 = vector.load %arg6[%c1_24, %c0_25] : memref<3x32xf32, #tpu.memory_space<vmem>>, vector<1x32xf32>
    %47 = vector.shape_cast %46 : vector<1x32xf32> to vector<32xf32>
    %cst_26 = arith.constant dense<0.000000e+00> : vector<8xf32>
    %48 = vector.multi_reduction <add>, %43, %cst_26 [1] : vector<8x32xf32> to vector<8xf32>
    %49 = vector.shape_cast %48 : vector<8xf32> to vector<8x1xf32>
    %cst_27 = arith.constant 3.200000e+01 : f32
    %50 = vector.broadcast %cst_27 : f32 to vector<8x1xf32>
    %51 = arith.divf %49, %50 : vector<8x1xf32>
    %52 = vector.broadcast %51 : vector<8x1xf32> to vector<8x32xf32>
    %53 = arith.subf %43, %52 : vector<8x32xf32>
    %54 = arith.mulf %53, %53 : vector<8x32xf32>
    %cst_28 = arith.constant dense<0.000000e+00> : vector<8xf32>
    %55 = vector.multi_reduction <add>, %54, %cst_28 [1] : vector<8x32xf32> to vector<8xf32>
    %56 = vector.shape_cast %55 : vector<8xf32> to vector<8x1xf32>
    %cst_29 = arith.constant 3.200000e+01 : f32
    %57 = vector.broadcast %cst_29 : f32 to vector<8x1xf32>
    %58 = arith.divf %56, %57 : vector<8x1xf32>
    %59 = vector.broadcast %51 : vector<8x1xf32> to vector<8x32xf32>
    %60 = arith.subf %43, %59 : vector<8x32xf32>
    %cst_30 = arith.constant 9.99999974E-6 : f32
    %61 = vector.broadcast %cst_30 : f32 to vector<8x1xf32>
    %62 = arith.addf %58, %61 : vector<8x1xf32>
    %63 = math.rsqrt %62 : vector<8x1xf32>
    %64 = vector.broadcast %63 : vector<8x1xf32> to vector<8x32xf32>
    %65 = arith.mulf %60, %64 : vector<8x32xf32>
    %66 = vector.shape_cast %45 : vector<32xf32> to vector<1x32xf32>
    %67 = vector.broadcast %66 : vector<1x32xf32> to vector<8x32xf32>
    %68 = arith.mulf %65, %67 : vector<8x32xf32>
    %69 = vector.shape_cast %47 : vector<32xf32> to vector<1x32xf32>
    %70 = vector.broadcast %69 : vector<1x32xf32> to vector<8x32xf32>
    %71 = arith.addf %68, %70 : vector<8x32xf32>
    %72 = arith.truncf %71 : vector<8x32xf32> to vector<8x32xbf16>
    %c0_31 = arith.constant 0 : index
    %c0_32 = arith.constant 0 : index
    %73 = vector.load %arg3[%c0_31, %c0_32] : memref<32x32xbf16, #tpu.memory_space<vmem>>, vector<32x32xbf16>
    %cst_33 = arith.constant dense<0.000000e+00> : vector<8x32xf32>
    %74 = tpu.matmul %72, %73, %cst_33 {dimension_numbers = #tpu.dot_dimension_numbers<[1], [0], [0], [1], [0, 0, 1, 1], [], []>} : vector<8x32xbf16>, vector<32x32xbf16>, vector<8x32xf32> -> vector<8x32xf32>
    %c0_34 = arith.constant 0 : index
    %c0_35 = arith.constant 0 : index
    %75 = vector.load %arg4[%c0_34, %c0_35] : memref<1x32xf32, #tpu.memory_space<vmem>>, vector<1x32xf32>
    %76 = vector.shape_cast %75 : vector<1x32xf32> to vector<32xf32>
    %77 = vector.shape_cast %76 : vector<32xf32> to vector<1x32xf32>
    %78 = vector.broadcast %77 : vector<1x32xf32> to vector<8x32xf32>
    %79 = arith.addf %74, %78 : vector<8x32xf32>
    %c2_36 = arith.constant 2 : index
    %c0_37 = arith.constant 0 : index
    %80 = vector.load %arg5[%c2_36, %c0_37] : memref<3x32xf32, #tpu.memory_space<vmem>>, vector<1x32xf32>
    %81 = vector.shape_cast %80 : vector<1x32xf32> to vector<32xf32>
    %c2_38 = arith.constant 2 : index
    %c0_39 = arith.constant 0 : index
    %82 = vector.load %arg6[%c2_38, %c0_39] : memref<3x32xf32, #tpu.memory_space<vmem>>, vector<1x32xf32>
    %83 = vector.shape_cast %82 : vector<1x32xf32> to vector<32xf32>
    %cst_40 = arith.constant dense<0.000000e+00> : vector<8xf32>
    %84 = vector.multi_reduction <add>, %79, %cst_40 [1] : vector<8x32xf32> to vector<8xf32>
    %85 = vector.shape_cast %84 : vector<8xf32> to vector<8x1xf32>
    %cst_41 = arith.constant 3.200000e+01 : f32
    %86 = vector.broadcast %cst_41 : f32 to vector<8x1xf32>
    %87 = arith.divf %85, %86 : vector<8x1xf32>
    %88 = vector.broadcast %87 : vector<8x1xf32> to vector<8x32xf32>
    %89 = arith.subf %79, %88 : vector<8x32xf32>
    %90 = arith.mulf %89, %89 : vector<8x32xf32>
    %cst_42 = arith.constant dense<0.000000e+00> : vector<8xf32>
    %91 = vector.multi_reduction <add>, %90, %cst_42 [1] : vector<8x32xf32> to vector<8xf32>
    %92 = vector.shape_cast %91 : vector<8xf32> to vector<8x1xf32>
    %cst_43 = arith.constant 3.200000e+01 : f32
    %93 = vector.broadcast %cst_43 : f32 to vector<8x1xf32>
    %94 = arith.divf %92, %93 : vector<8x1xf32>
    %95 = vector.broadcast %87 : vector<8x1xf32> to vector<8x32xf32>
    %96 = arith.subf %79, %95 : vector<8x32xf32>
    %cst_44 = arith.constant 9.99999974E-6 : f32
    %97 = vector.broadcast %cst_44 : f32 to vector<8x1xf32>
    %98 = arith.addf %94, %97 : vector<8x1xf32>
    %99 = math.rsqrt %98 : vector<8x1xf32>
    %100 = vector.broadcast %99 : vector<8x1xf32> to vector<8x32xf32>
    %101 = arith.mulf %96, %100 : vector<8x32xf32>
    %102 = vector.shape_cast %81 : vector<32xf32> to vector<1x32xf32>
    %103 = vector.broadcast %102 : vector<1x32xf32> to vector<8x32xf32>
    %104 = arith.mulf %101, %103 : vector<8x32xf32>
    %105 = vector.shape_cast %83 : vector<32xf32> to vector<1x32xf32>
    %106 = vector.broadcast %105 : vector<1x32xf32> to vector<8x32xf32>
    %107 = arith.addf %104, %106 : vector<8x32xf32>
    %c0_45 = arith.constant 0 : index
    %c0_46 = arith.constant 0 : index
    %c0_47 = arith.constant 0 : index
    %108 = vector.load %arg7[%c0_45, %c0_46, %c0_47] : memref<1x8x32xf32, #tpu.memory_space<vmem>>, vector<1x8x32xf32>
    %109 = vector.shape_cast %108 : vector<1x8x32xf32> to vector<8x32xf32>
    %110 = vector.shape_cast %107 : vector<8x32xf32> to vector<1x8x32xf32>
    tpu.vector_store %arg7[%c0_45, %c0_46, %c0_47], %110 {strides = array<i32>} : memref<1x8x32xf32, #tpu.memory_space<vmem>>, vector<1x8x32xf32>,
    return
  }
  func.func @transform_0(%arg0: i32) -> (i32, i32, i32, i32) {
    %c0_i32 = arith.constant 0 : i32
    %c0_i32_0 = arith.constant 0 : i32
    %c0_i32_1 = arith.constant 0 : i32
    %c0_i32_2 = arith.constant 0 : i32
    return %arg0, %c0_i32, %c0_i32_0, %c0_i32_1 : i32, i32, i32, i32
  }
  func.func @transform_1(%arg0: i32) -> (i32, i32) {
    %c0_i32 = arith.constant 0 : i32
    %c0_i32_0 = arith.constant 0 : i32
    %c0_i32_1 = arith.constant 0 : i32
    return %c0_i32, %c0_i32_0 : i32, i32
  }
  func.func @transform_2(%arg0: i32) -> (i32, i32) {
    %c0_i32 = arith.constant 0 : i32
    %c0_i32_0 = arith.constant 0 : i32
    %c0_i32_1 = arith.constant 0 : i32
    return %c0_i32, %c0_i32_0 : i32, i32
  }
  func.func @transform_3(%arg0: i32) -> (i32, i32) {
    %c0_i32 = arith.constant 0 : i32
    %c0_i32_0 = arith.constant 0 : i32
    %c0_i32_1 = arith.constant 0 : i32
    return %c0_i32, %c0_i32_0 : i32, i32
  }
  func.func @transform_4(%arg0: i32) -> (i32, i32) {
    %c0_i32 = arith.constant 0 : i32
    %c0_i32_0 = arith.constant 0 : i32
    %c0_i32_1 = arith.constant 0 : i32
    return %c0_i32, %c0_i32_0 : i32, i32
  }
  func.func @transform_5(%arg0: i32) -> (i32, i32) {
    %c0_i32 = arith.constant 0 : i32
    %c0_i32_0 = arith.constant 0 : i32
    %c0_i32_1 = arith.constant 0 : i32
    return %c0_i32, %c0_i32_0 : i32, i32
  }
  func.func @transform_6(%arg0: i32) -> (i32, i32, i32) {
    %c0_i32 = arith.constant 0 : i32
    %c0_i32_0 = arith.constant 0 : i32
    %c0_i32_1 = arith.constant 0 : i32
    return %arg0, %c0_i32, %c0_i32_0 : i32, i32, i32
  }
}

</mosaic_0001>

<llo_original>
// kernel: mlstm_block.3
$region0: #{mlstm_block.3}
  #allocation0 [shape = 'u32[]', space=smem, size = 0x4, offset = 0x4, fixed_abs, tag = 'smem constant byte address 0x4 - core index']
  #allocation1 [shape = 'u32[144,128]{1,0:T(1,128)}', space=vmem, size = 0x12000, scoped, tag = 'internal scratch']
  %s0 = inlined_call_operand.vmem [shape: f32[2,4,8,32], index: 0, kind: input, shape index: {}]
  %s1 = inlined_call_operand.vmem [shape: f32[1,32], index: 1, kind: input, shape index: {}]
  %s2 = inlined_call_operand.vmem [shape: bf16[32,32], index: 2, kind: input, shape index: {}]
  %s3 = inlined_call_operand.vmem [shape: f32[1,32], index: 3, kind: input, shape index: {}]
  %s4 = inlined_call_operand.vmem [shape: f32[3,32], index: 4, kind: input, shape index: {}]
  %s5 = inlined_call_operand.vmem [shape: f32[3,32], index: 5, kind: input, shape index: {}]
  %s6 = inlined_call_operand.hbm [shape: f32[2,8,32], index: 6, kind: output, shape index: {}]
  %s7 = sld [smem:[#allocation0]]
  $region57: #{mlstm_block.3} parent=0
    _
  %s9 = ssub.s32 1, %s7
  %s10 = scalar_select 0, %s9, %s7
  $region1: #{mlstm_block.3} parent=0
    #allocation2 [shape = 'u8[8192]{0}', space=vmem, size = 0x2000, scoped, tag = 'output window, operand 0']
    #allocation3 [shape = 's32[2]{0}', space=sflag, size = 0x8, scoped, tag = 'scoped memory for mlstm_block.3']
    %11 = vsyncpa [#allocation3], 0
    %s12 = scalar_lea.sflag [#allocation3], 1
    %13 = vsyncpa %s12, 0
    loop: start=0, step=1, limit=4
    $region2: #{mlstm_block.3} parent=1 // loop_pre_header
      _
    $region3: #{mlstm_block.3} parent=1 // loop_header
      %s15 = sphi 0, %s19
      %p16 = scmp.ge.s32.totalorder %s15, 4
      %s25 = sphi 0, %s27
      %s28 = sphi 0, %s25
      %s29 = sphi 0, %s28
      %s45 = sphi 0, %s29
      %s49 = sphi 0, %s49
      %s51 = sphi 0, %s49
      %s52 = sphi 0, %s51
      %s66 = sphi 0, %s52
      %s70 = sphi 0, %s70
      %s72 = sphi 0, %s70
      %s73 = sphi 0, %s72
      %s87 = sphi 0, %s73
      %s91 = sphi 0, %s91
      %s93 = sphi 0, %s91
      %s94 = sphi 0, %s93
      %s108 = sphi 0, %s94
      %s112 = sphi 0, %s112
      %s114 = sphi 0, %s112
      %s115 = sphi 0, %s114
      %s129 = sphi 0, %s115
      %s133 = sphi 0, %s133
      %s135 = sphi 0, %s133
      %s136 = sphi 0, %s135
      %s150 = sphi 0, %s136
      %s156 = sphi 0, %s158
      %s159 = sphi 0, %s156
      %s160 = sphi 0, %s159
      %s176 = sphi 0, %s160
    $region4: #{mlstm_block.3} parent=1 // loop_header_branch
      %18 = sbr.rel (%p16) target = $region8
    $region5: #{mlstm_block.3} parent=1 // loop_body
      %s20 = ssub.s32 %s15, 1
      %s21 = ssub.s32 %s15, 2
      %s22 = sadd.s32 %s15, 1
      %s23 = ssub.s32 %s15, %s22
      %p24 = scmp.eq.s32.totalorder %s23, 0
      %s26 = sadd.s32 %s25, 1
      %s27 = scalar_select %p24, %s25, %s26
      %p30 = pneg %p24
      %p31 = scmp.eq.s32.totalorder %s15, 1
      %p32 = por %p30, %p31
      %p33 = scmp.ne.s32.totalorder %s25, %s28
      %p34 = scmp.eq.s32.totalorder %s15, 0
      %p35 = por %p33, %p34
      %p36 = scmp.ne.s32.totalorder %s25, %s28
      %p37 = scmp.eq.s32.totalorder %s20, 1
      %p38 = por %p36, %p37
      %p39 = scmp.ne.s32.totalorder %s28, %s29
      %p40 = scmp.eq.s32.totalorder %s20, 0
      %p41 = por %p39, %p40
      %p42 = scmp.ne.s32.totalorder %s28, %s29
      %p43 = scmp.eq.s32.totalorder %s21, 1
      %p44 = por %p42, %p43
      %p46 = scmp.ne.s32.totalorder %s29, %s45
      %p47 = scmp.eq.s32.totalorder %s21, 0
      %p48 = por %p46, %p47
      %s50 = sadd.s32 %s49, 1
      %p53 = scmp.eq.s32.totalorder %s15, 1
      %p54 = scmp.ne.s32.totalorder %s49, %s51
      %p55 = scmp.eq.s32.totalorder %s15, 0
      %p56 = por %p54, %p55
      %p57 = scmp.ne.s32.totalorder %s49, %s51
      %p58 = scmp.eq.s32.totalorder %s20, 1
      %p59 = por %p57, %p58
      %p60 = scmp.ne.s32.totalorder %s51, %s52
      %p61 = scmp.eq.s32.totalorder %s20, 0
      %p62 = por %p60, %p61
      %p63 = scmp.ne.s32.totalorder %s51, %s52
      %p64 = scmp.eq.s32.totalorder %s21, 1
      %p65 = por %p63, %p64
      %p67 = scmp.ne.s32.totalorder %s52, %s66
      %p68 = scmp.eq.s32.totalorder %s21, 0
      %p69 = por %p67, %p68
      %s71 = sadd.s32 %s70, 1
      %p74 = scmp.eq.s32.totalorder %s15, 1
      %p75 = scmp.ne.s32.totalorder %s70, %s72
      %p76 = scmp.eq.s32.totalorder %s15, 0
      %p77 = por %p75, %p76
      %p78 = scmp.ne.s32.totalorder %s70, %s72
      %p79 = scmp.eq.s32.totalorder %s20, 1
      %p80 = por %p78, %p79
      %p81 = scmp.ne.s32.totalorder %s72, %s73
      %p82 = scmp.eq.s32.totalorder %s20, 0
      %p83 = por %p81, %p82
      %p84 = scmp.ne.s32.totalorder %s72, %s73
      %p85 = scmp.eq.s32.totalorder %s21, 1
      %p86 = por %p84, %p85
      %p88 = scmp.ne.s32.totalorder %s73, %s87
      %p89 = scmp.eq.s32.totalorder %s21, 0
      %p90 = por %p88, %p89
      %s92 = sadd.s32 %s91, 1
      %p95 = scmp.eq.s32.totalorder %s15, 1
      %p96 = scmp.ne.s32.totalorder %s91, %s93
      %p97 = scmp.eq.s32.totalorder %s15, 0
      %p98 = por %p96, %p97
      %p99 = scmp.ne.s32.totalorder %s91, %s93
      %p100 = scmp.eq.s32.totalorder %s20, 1
      %p101 = por %p99, %p100
      %p102 = scmp.ne.s32.totalorder %s93, %s94
      %p103 = scmp.eq.s32.totalorder %s20, 0
      %p104 = por %p102, %p103
      %p105 = scmp.ne.s32.totalorder %s93, %s94
      %p106 = scmp.eq.s32.totalorder %s21, 1
      %p107 = por %p105, %p106
      %p109 = scmp.ne.s32.totalorder %s94, %s108
      %p110 = scmp.eq.s32.totalorder %s21, 0
      %p111 = por %p109, %p110
      %s113 = sadd.s32 %s112, 1
      %p116 = scmp.eq.s32.totalorder %s15, 1
      %p117 = scmp.ne.s32.totalorder %s112, %s114
      %p118 = scmp.eq.s32.totalorder %s15, 0
      %p119 = por %p117, %p118
      %p120 = scmp.ne.s32.totalorder %s112, %s114
      %p121 = scmp.eq.s32.totalorder %s20, 1
      %p122 = por %p120, %p121
      %p123 = scmp.ne.s32.totalorder %s114, %s115
      %p124 = scmp.eq.s32.totalorder %s20, 0
      %p125 = por %p123, %p124
      %p126 = scmp.ne.s32.totalorder %s114, %s115
      %p127 = scmp.eq.s32.totalorder %s21, 1
      %p128 = por %p126, %p127
      %p130 = scmp.ne.s32.totalorder %s115, %s129
      %p131 = scmp.eq.s32.totalorder %s21, 0
      %p132 = por %p130, %p131
      %s134 = sadd.s32 %s133, 1
      %p137 = scmp.eq.s32.totalorder %s15, 1
      %p138 = scmp.ne.s32.totalorder %s133, %s135
      %p139 = scmp.eq.s32.totalorder %s15, 0
      %p140 = por %p138, %p139
      %p141 = scmp.ne.s32.totalorder %s133, %s135
      %p142 = scmp.eq.s32.totalorder %s20, 1
      %p143 = por %p141, %p142
      %p144 = scmp.ne.s32.totalorder %s135, %s136
      %p145 = scmp.eq.s32.totalorder %s20, 0
      %p146 = por %p144, %p145
      %p147 = scmp.ne.s32.totalorder %s135, %s136
      %p148 = scmp.eq.s32.totalorder %s21, 1
      %p149 = por %p147, %p148
      %p151 = scmp.ne.s32.totalorder %s136, %s150
      %p152 = scmp.eq.s32.totalorder %s21, 0
      %p153 = por %p151, %p152
      %s154 = ssub.s32 %s15, %s22
      %p155 = scmp.eq.s32.totalorder %s154, 0
      %s157 = sadd.s32 %s156, 1
      %s158 = scalar_select %p155, %s156, %s157
      %p161 = pneg %p155
      %p162 = scmp.eq.s32.totalorder %s15, 1
      %p163 = por %p161, %p162
      %p164 = scmp.ne.s32.totalorder %s156, %s159
      %p165 = scmp.eq.s32.totalorder %s15, 0
      %p166 = por %p164, %p165
      %p167 = scmp.ne.s32.totalorder %s156, %s159
      %p168 = scmp.eq.s32.totalorder %s20, 1
      %p169 = por %p167, %p168
      %p170 = scmp.ne.s32.totalorder %s159, %s160
      %p171 = scmp.eq.s32.totalorder %s20, 0
      %p172 = por %p170, %p171
      %p173 = scmp.ne.s32.totalorder %s159, %s160
      %p174 = scmp.eq.s32.totalorder %s21, 1
      %p175 = por %p173, %p174
      %p177 = scmp.ne.s32.totalorder %s160, %s176
      %p178 = scmp.eq.s32.totalorder %s21, 0
      %p179 = por %p177, %p178
      %p180 = scmp.le.s32.totalorder 1, %s15
      %p181 = scmp.lt.s32.totalorder %s15, 3
      %p182 = pnand %p180, %p181
      %p183 = pneg %p182
      // Predicated region
      $region9: #{mlstm_block.3} parent=5 // pred_check
        _
      $region10: #{mlstm_block.3} parent=5 // pred_check_branch
        %185 = sbr.rel (%p182) target = $region12
      $region11: #{mlstm_block.3} parent=5 // pred_region
        %s186 = ssub.s32 %s15, 1
        // Predicated region
        $region13: #{mlstm_block.3} parent=11 // pred_check
          %p187 = pneg %p62
        $region14: #{mlstm_block.3} parent=11 // pred_check_branch
          %189 = sbr.rel (%p187) target = $region16
        $region15: #{mlstm_block.3} parent=11 // pred_region
          _
        $region16: #{mlstm_block.3} parent=11 // pred_fallthru
          _
        // Predicated region
        $region17: #{mlstm_block.3} parent=11 // pred_check
          %p190 = pneg %p83
        $region18: #{mlstm_block.3} parent=11 // pred_check_branch
          %192 = sbr.rel (%p190) target = $region20
        $region19: #{mlstm_block.3} parent=11 // pred_region
          _
        $region20: #{mlstm_block.3} parent=11 // pred_fallthru
          _
        // Predicated region
        $region21: #{mlstm_block.3} parent=11 // pred_check
          %p193 = pneg %p104
        $region22: #{mlstm_block.3} parent=11 // pred_check_branch
          %195 = sbr.rel (%p193) target = $region24
        $region23: #{mlstm_block.3} parent=11 // pred_region
          _
        $region24: #{mlstm_block.3} parent=11 // pred_fallthru
          _
        // Predicated region
        $region25: #{mlstm_block.3} parent=11 // pred_check
          %p196 = pneg %p125
        $region26: #{mlstm_block.3} parent=11 // pred_check_branch
          %198 = sbr.rel (%p196) target = $region28
        $region27: #{mlstm_block.3} parent=11 // pred_region
          _
        $region28: #{mlstm_block.3} parent=11 // pred_fallthru
          _
        // Predicated region
        $region29: #{mlstm_block.3} parent=11 // pred_check
          %p199 = pneg %p146
        $region30: #{mlstm_block.3} parent=11 // pred_check_branch
          %201 = sbr.rel (%p199) target = $region32
        $region31: #{mlstm_block.3} parent=11 // pred_region
          _
        $region32: #{mlstm_block.3} parent=11 // pred_fallthru
          _
      $region12: #{mlstm_block.3} parent=5 // pred_fallthru
        _
      %p202 = scmp.lt.s32.totalorder %s15, 2
      // Predicated region
      $region33: #{mlstm_block.3} parent=5 // pred_check
        %p203 = pneg %p202
      $region34: #{mlstm_block.3} parent=5 // pred_check_branch
        %205 = sbr.rel (%p203) target = $region36
      $region35: #{mlstm_block.3} parent=5 // pred_region
        // Predicated region
        $region37: #{mlstm_block.3} parent=35 // pred_check
          %p206 = pneg %p35
        $region38: #{mlstm_block.3} parent=35 // pred_check_branch
          %208 = sbr.rel (%p206) target = $region40
        $region39: #{mlstm_block.3} parent=35 // pred_region
          %p209 = scmp.lt.s32.totalorder %s15, 1
          %s210 = scalar_select %p209, %s15, 1
          %s211 = smul.addr %s210, 4
          %s212 = smul.addr %s211, 8
          %s213 = scalar_lea.vmem %s0, %s212
        $region40: #{mlstm_block.3} parent=35 // pred_fallthru
          _
      $region36: #{mlstm_block.3} parent=5 // pred_fallthru
        _
      %p214 = scmp.le.s32.totalorder 1, %s15
      %p215 = scmp.lt.s32.totalorder %s15, 3
      %p216 = pnand %p214, %p215
      %p217 = pneg %p216
      // Predicated region
      $region41: #{mlstm_block.3} parent=5 // pred_check
        _
      $region42: #{mlstm_block.3} parent=5 // pred_check_branch
        %219 = sbr.rel (%p216) target = $region44
      $region43: #{mlstm_block.3} parent=5 // pred_region
        %s220 = ssub.s32 %s15, 1
        %p221 = scmp.lt.s32.totalorder %s20, 1
        %s222 = scalar_select %p221, %s20, 1
        %s223 = smul.addr %s222, 4
        %s224 = smul.addr %s223, 8
        %s225 = scalar_lea.vmem %s0, %s224
        %p226 = pneg %p41
        %p227 = pneg %p38
        %p228 = pneg %p62
        %p229 = pneg %p59
        %p230 = pneg %p83
        %p231 = pneg %p80
        %p232 = pneg %p104
        %p233 = pneg %p101
        %p234 = pneg %p125
        %p235 = pneg %p122
        %p236 = pneg %p146
        %p237 = pneg %p143
        %p238 = pneg %p172
        %p239 = pneg %p169
        %s240 = sand.u32 %s159, 1
        %s241 = scalar_lea.sflag [#allocation3], %s240
        %s242 = sand.u32 %s159, 1
        %s243 = smul.addr %s242, 8
        %s244 = scalar_lea.vmem [#allocation2], %s243
        %p245 = scmp.lt.s32.totalorder %s20, 1
        %s246 = scalar_select %p245, %s20, 1
        %s247 = smul.addr %s246, 4
        %s248 = smul.addr %s247, 8
        %s249 = scalar_lea.vmem %s0, %s248
        %v251 = vld [vmem:[%s249] sm:$0xff]
        %s252 = scalar_lea.vmem %s249, 8
        %v253 = vld [vmem:[%s252] sm:$0xff]
        %s254 = scalar_lea.vmem %s249, 16
        %v255 = vld [vmem:[%s254] sm:$0xff]
        %s256 = scalar_lea.vmem %s249, 24
        %v257 = vld [vmem:[%s256] sm:$0xff]
        %v258 = vld [vmem:[%s1] sm:$0x1]
        %v260 = vlaneseq
        %v261 = vshrl.u32 %v260, 7
        %v262 = vsub.s32 0, %v261
        %v263 = vrot.slane %v258, %v262
        %v265 = vmul.f32 %v263, %v251
        %v266 = vmul.f32 %v253, %v265
        %v267 = vadd.f32 %v266, %v255
        %v268 = vld [vmem:[%s4] sm:$0x1]
        %v269 = vld [vmem:[%s5] sm:$0x1]
        %vm270 = vcmask 261120
        %v271 = vsel %vm270, %v267, 0.0
        %272 = vadd.xlane.f32.xlu0 %v271
        %v273 = vpop.xlane.xlu0 %272
        %v274 = vrcp.pop 32.0
        %v275 = vmul.f32 %v273, %v274
        %v276 = vsub.f32 %v267, %v275
        %v277 = vmul.f32 %v276, %v276
        %v278 = vsel %vm270, %v277, 0.0
        %279 = vadd.xlane.f32.xlu0 %v278
        %v280 = vpop.xlane.xlu0 %279
        %v281 = vmul.f32 %v280, %v274
        %v282 = vadd.f32 %v281, 1e-05
        %v283 = vrsqrt.pop %v282
        %v284 = vmul.f32 %v276, %v283
        %v285 = vlaneseq
        %v286 = vshrl.u32 %v285, 7
        %v287 = vsub.s32 0, %v286
        %v288 = vrot.slane %v268, %v287
        %v289 = vmul.f32 %v284, %v288
        %v290 = vlaneseq
        %v291 = vshrl.u32 %v290, 7
        %v292 = vsub.s32 0, %v291
        %v293 = vrot.slane %v269, %v292
        %v294 = vadd.f32 %v289, %v293
        %v295 = vmul.f32 %v294, %v257
        %v296 = vld [vmem:[%s4 + $0x1] sm:$0x1]
        %v297 = vld [vmem:[%s5 + $0x1] sm:$0x1]
        %v298 = vsel %vm270, %v295, 0.0
        %299 = vadd.xlane.f32.xlu0 %v298
        %v300 = vpop.xlane.xlu0 %299
        %v301 = vmul.f32 %v300, %v274
        %v302 = vsub.f32 %v295, %v301
        %v303 = vmul.f32 %v302, %v302
        %v304 = vsel %vm270, %v303, 0.0
        %305 = vadd.xlane.f32.xlu0 %v304
        %v306 = vpop.xlane.xlu0 %305
        %v307 = vmul.f32 %v306, %v274
        %v308 = vadd.f32 %v307, 1e-05
        %v309 = vrsqrt.pop %v308
        %v310 = vmul.f32 %v302, %v309
        %v311 = vlaneseq
        %v312 = vshrl.u32 %v311, 7
        %v313 = vsub.s32 0, %v312
        %v314 = vrot.slane %v296, %v313
        %v315 = vmul.f32 %v310, %v314
        %v316 = vlaneseq
        %v317 = vshrl.u32 %v316, 7
        %v318 = vsub.s32 0, %v317
        %v319 = vrot.slane %v297, %v318
        %v320 = vadd.f32 %v315, %v319
        %v321 = vpack.c.bf16 %v320, %v320
        %v322 = vld [vmem:[%s2] sm:$0xf]
        %v323 = vld [vmem:[%s2 + $0x4] sm:$0xf]
        %v324 = vld [vmem:[%s2 + $0x8] sm:$0xf]
        %v325 = vld [vmem:[%s2 + $0xc] sm:$0xf]
        %v326 = vld [vmem:[%s3] sm:$0x1]
        %v328 = vlaneseq
        %v329 = vshrl.u32 %v328, 7
        %v330 = vsub.s32 0, %v329
        %v331 = vrot.slane %v326, %v330
        %v337 = vunpack.c.l.b16 %v322
        %v338 = vunpack.c.l.b16 %v323
        %v339 = vunpack.c.l.b16 %v324
        %v340 = vunpack.c.l.b16 %v325
        %v341 = vpack.c.b16 %v338, %v337
        %v342 = vpack.c.b16 %v340, %v339
        %v346 = vsel %vm270, %v321, 0
        %348 = vmatprep.subr.bf16.mxu0 0
        %349 = vmatpush1.bf16.msra.mxu0 %v341
        %350 = vmatprep.subr.bf16.mxu0 0
        %351 = vmatpush1.bf16.msra.mxu0 %v342
        %352 = vmatprep.subr.bf16.mxu0 0
        %353 = vmatpush1.bf16.msra.mxu0 0
        %354 = vmatprep.subr.bf16.mxu0 0
        %355 = vmatpush1.bf16.msra.mxu0 0
        %356 = vmatprep.subr.bf16.mxu0 0
        %357 = vmatpush1.bf16.msra.mxu0 0
        %358 = vmatprep.subr.bf16.mxu0 0
        %359 = vmatpush1.bf16.msra.mxu0 0
        %360 = vmatprep.subr.bf16.mxu0 0
        %361 = vmatpush1.bf16.msra.mxu0 0
        %362 = vmatprep.subr.bf16.mxu0 0
        %363 = vmatpush1.bf16.msra.mxu0 0
        %364 = vmatprep.subr.bf16.mxu0 0
        %365 = vmatpush1.bf16.msra.mxu0 0
        %366 = vmatprep.subr.bf16.mxu0 0
        %367 = vmatpush1.bf16.msra.mxu0 0
        %368 = vmatprep.subr.bf16.mxu0 0
        %369 = vmatpush1.bf16.msra.mxu0 0
        %370 = vmatprep.subr.bf16.mxu0 0
        %371 = vmatpush1.bf16.msra.mxu0 0
        %372 = vmatprep.subr.bf16.mxu0 0
        %373 = vmatpush1.bf16.msra.mxu0 0
        %374 = vmatprep.subr.bf16.mxu0 0
        %375 = vmatpush1.bf16.msra.mxu0 0
        %376 = vmatprep.subr.bf16.mxu0 0
        %377 = vmatpush1.bf16.msra.mxu0 0
        %378 = vmatprep.subr.bf16.mxu0 0
        %379 = vmatpush1.bf16.msra.mxu0 0
        %380 = vmatprep.mubr.bf16.mxu0 0
        %381 = vmatmul.mubr.bf16.gmra.mrb[0].mxu0 %v346
        %v382 = vpop.f32.mrb[0].mxu0
        %v383 = vadd.f32 %v331, %v382
        %v384 = vpop.f32.mrb[0].mxu0
        %v385 = vpop.f32.mrb[0].mxu0
        %v386 = vpop.f32.mrb[0].mxu0
        %387 = vdwg.mxu0
        %v388 = vld [vmem:[%s4 + $0x2] sm:$0x1]
        %v389 = vld [vmem:[%s5 + $0x2] sm:$0x1]
        %v390 = vsel %vm270, %v383, 0.0
        %391 = vadd.xlane.f32.xlu0 %v390
        %v392 = vpop.xlane.xlu0 %391
        %v393 = vmul.f32 %v392, %v274
        %v394 = vsub.f32 %v383, %v393
        %v395 = vmul.f32 %v394, %v394
        %v396 = vsel %vm270, %v395, 0.0
        %397 = vadd.xlane.f32.xlu0 %v396
        %v398 = vpop.xlane.xlu0 %397
        %v399 = vmul.f32 %v398, %v274
        %v400 = vadd.f32 %v399, 1e-05
        %v401 = vrsqrt.pop %v400
        %v402 = vmul.f32 %v394, %v401
        %v403 = vlaneseq
        %v404 = vshrl.u32 %v403, 7
        %v405 = vsub.s32 0, %v404
        %v406 = vrot.slane %v388, %v405
        %v407 = vmul.f32 %v402, %v406
        %v408 = vlaneseq
        %v409 = vshrl.u32 %v408, 7
        %v410 = vsub.s32 0, %v409
        %v411 = vrot.slane %v389, %v410
        %v412 = vadd.f32 %v407, %v411
        %413 = vst.msk [vmem:[%s244] sm:$0xff] %vm270, %v412
        %s414 = sand.u32 %s159, 1
        %s415 = scalar_lea.sflag [#allocation3], %s414
        %s416 = sand.u32 %s159, 1
        %s417 = smul.addr %s416, 8
        %s418 = scalar_lea.vmem [#allocation2], %s417
        // Predicated region
        $region45: #{mlstm_block.3} parent=43 // pred_check
          %p419 = pneg %p169
        $region46: #{mlstm_block.3} parent=43 // pred_check_branch
          %421 = sbr.rel (%p419) target = $region48
        $region47: #{mlstm_block.3} parent=43 // pred_region
          %s423 = ssub.s32 128, 128
          %424 = vsyncadd %s415, %s423
          %s425 = smul.addr %s20, 128
          %s426 = scalar_lea.hbm %s6, %s425
          %s428 = sshll.u32 %s418, 4
          %s429 = int_to_ptr.vmem [resolvable:$true] %s428
          %431 = dma.vmem_to_hbm [thread:$0]  %s429, 128, %s426, %s415
        $region48: #{mlstm_block.3} parent=43 // pred_fallthru
          _
      $region44: #{mlstm_block.3} parent=5 // pred_fallthru
        _
      %p432 = scmp.le.s32.totalorder 2, %s15
      // Predicated region
      $region49: #{mlstm_block.3} parent=5 // pred_check
        %p433 = pneg %p432
      $region50: #{mlstm_block.3} parent=5 // pred_check_branch
        %435 = sbr.rel (%p433) target = $region52
      $region51: #{mlstm_block.3} parent=5 // pred_region
        %s436 = ssub.s32 %s15, 2
        // Predicated region
        $region53: #{mlstm_block.3} parent=51 // pred_check
          %p437 = pneg %p175
        $region54: #{mlstm_block.3} parent=51 // pred_check_branch
          %439 = sbr.rel (%p437) target = $region56
        $region55: #{mlstm_block.3} parent=51 // pred_region
          %s440 = sand.u32 %s160, 1
          %s441 = scalar_lea.sflag [#allocation3], %s440
          %s442 = sand.u32 %s160, 1
          %s443 = smul.addr %s442, 8
          %s444 = scalar_lea.vmem [#allocation2], %s443
          %445 = dma.done %s441, 128
        $region56: #{mlstm_block.3} parent=51 // pred_fallthru
          _
      $region52: #{mlstm_block.3} parent=5 // pred_fallthru
        _
    $region6: #{mlstm_block.3} parent=1 // loop_footer
      %s19 = sadd.s32 1, %s15
    $region7: #{mlstm_block.3} parent=1 // loop_footer_branch
      %14 = sbr.rel target = $region3
    $region8: #{mlstm_block.3} parent=1 // loop_exit
      _
    %446 = vsyncpa [#allocation3], 1
    %s447 = scalar_lea.sflag [#allocation3], 1
    %448 = vsyncpa %s447, 1

// kernel: mlstm_block.2
$region0: #{mlstm_block.2}
  #allocation0 [shape = 'u32[]', space=smem, size = 0x4, offset = 0x4, fixed_abs, tag = 'smem constant byte address 0x4 - core index']
  #allocation1 [shape = 'u32[144,128]{1,0:T(1,128)}', space=vmem, size = 0x12000, scoped, tag = 'internal scratch']
  %s0 = inlined_call_operand.hbm [shape: f32[2,8,16], index: 0, kind: input, shape index: {}]
  %s1 = inlined_call_operand.vmem [shape: f32[1,16], index: 1, kind: input, shape index: {}]
  %s2 = inlined_call_operand.hbm [shape: f32[1,16], index: 2, kind: input, shape index: {}]
  %s3 = inlined_call_operand.hbm [shape: bf16[16,64], index: 3, kind: input, shape index: {}]
  %s4 = inlined_call_operand.hbm [shape: f32[1,64], index: 4, kind: input, shape index: {}]
  %s5 = inlined_call_operand.hbm [shape: f32[3,32], index: 5, kind: input, shape index: {}]
  %s6 = inlined_call_operand.hbm [shape: f32[1,32], index: 6, kind: input, shape index: {}]
  %s7 = inlined_call_operand.vmem [shape: bf16[32,160], index: 7, kind: input, shape index: {}]
  %s8 = inlined_call_operand.hbm [shape: f32[1,160], index: 8, kind: input, shape index: {}]
  %s9 = inlined_call_operand.vmem [shape: bf16[32,32], index: 9, kind: input, shape index: {}]
  %s10 = inlined_call_operand.hbm [shape: f32[1,32], index: 10, kind: input, shape index: {}]
  %s11 = inlined_call_operand.hbm [shape: f32[4,32], index: 11, kind: input, shape index: {}]
  %s12 = inlined_call_operand.hbm [shape: f32[4,32], index: 12, kind: input, shape index: {}]
  %s13 = inlined_call_operand.vmem [shape: f32[2,4,8,32], index: 13, kind: output, shape index: {0}]
  %s14 = inlined_call_operand.vmem [shape: f32[2,4,32], index: 14, kind: output, shape index: {1}]
  %15 = xla_tuple %s13, %s14
  %s16 = sld [smem:[#allocation0]]
  $region133: #{mlstm_block.2} parent=0
    _
  %s18 = ssub.s32 1, %s16
  %s19 = scalar_select 0, %s18, %s16
  $region1: #{mlstm_block.2} parent=0
    #allocation2 [shape = 'u8[8192]{0}', space=vmem, size = 0x2000, scoped, tag = 'input window, operand 0']
    #allocation3 [shape = 's32[2]{0}', space=sflag, size = 0x8, scoped, tag = 'scoped memory for mlstm_block.2']
    #allocation4 [shape = 'u8[512]{0}', space=vmem, size = 0x400, scoped, tag = 'input window, operand 2, single buffered']
    #allocation5 [shape = 's32[1]{0}', space=sflag, size = 0x4, scoped, tag = 'scoped memory for mlstm_block.2']
    #allocation6 [shape = 'u8[4096]{0}', space=vmem, size = 0x1000, scoped, tag = 'input window, operand 3, single buffered']
    #allocation7 [shape = 'u8[512]{0}', space=vmem, size = 0x400, scoped, tag = 'input window, operand 4, single buffered']
    #allocation8 [shape = 's32[1]{0}', space=sflag, size = 0x4, scoped, tag = 'scoped memory for mlstm_block.2']
    #allocation9 [shape = 'u8[2048]{0}', space=vmem, size = 0x800, scoped, tag = 'input window, operand 5, single buffered']
    #allocation10 [shape = 'u8[512]{0}', space=vmem, size = 0x400, scoped, tag = 'input window, operand 6, single buffered']
    #allocation11 [shape = 's32[1]{0}', space=sflag, size = 0x4, scoped, tag = 'scoped memory for mlstm_block.2']
    #allocation12 [shape = 'u8[1024]{0}', space=vmem, size = 0x400, scoped, tag = 'input window, operand 8, single buffered']
    #allocation13 [shape = 'u8[512]{0}', space=vmem, size = 0x400, scoped, tag = 'input window, operand 10, single buffered']
    #allocation14 [shape = 's32[1]{0}', space=sflag, size = 0x4, scoped, tag = 'scoped memory for mlstm_block.2']
    #allocation15 [shape = 'u8[2048]{0}', space=vmem, size = 0x800, scoped, tag = 'input window, operand 11, single buffered']
    #allocation16 [shape = 'u8[2048]{0}', space=vmem, size = 0x800, scoped, tag = 'input window, operand 12, single buffered']
    #allocation17 [shape = 's32[1]{0}', space=sflag, size = 0x4, scoped, tag = 'scoped memory for mlstm_block.2']
    %20 = vsyncpa [#allocation3], 0
    %s21 = scalar_lea.sflag [#allocation3], 1
    %22 = vsyncpa %s21, 0
    %23 = vsyncpa [#allocation5], 0
    %24 = vsyncpa [#allocation8], 0
    %25 = vsyncpa [#allocation11], 0
    %26 = vsyncpa [#allocation14], 0
    %27 = vsyncpa [#allocation17], 0
    loop: start=0, step=1, limit=4
    $region2: #{mlstm_block.2} parent=1 // loop_pre_header
      _
    $region3: #{mlstm_block.2} parent=1 // loop_header
      %s29 = sphi 0, %s33
      %p30 = scmp.ge.s32.totalorder %s29, 4
      %s39 = sphi 0, %s41
      %s42 = sphi 0, %s39
      %s43 = sphi 0, %s42
      %s59 = sphi 0, %s43
      %s63 = sphi 0, %s63
      %s65 = sphi 0, %s63
      %s66 = sphi 0, %s65
      %s80 = sphi 0, %s66
      %s84 = sphi 0, %s84
      %s86 = sphi 0, %s84
      %s87 = sphi 0, %s86
      %s101 = sphi 0, %s87
      %s105 = sphi 0, %s105
      %s107 = sphi 0, %s105
      %s108 = sphi 0, %s107
      %s122 = sphi 0, %s108
      %s126 = sphi 0, %s126
      %s128 = sphi 0, %s126
      %s129 = sphi 0, %s128
      %s143 = sphi 0, %s129
      %s147 = sphi 0, %s147
      %s149 = sphi 0, %s147
      %s150 = sphi 0, %s149
      %s164 = sphi 0, %s150
      %s168 = sphi 0, %s168
      %s170 = sphi 0, %s168
      %s171 = sphi 0, %s170
      %s185 = sphi 0, %s171
      %s189 = sphi 0, %s189
      %s191 = sphi 0, %s189
      %s192 = sphi 0, %s191
      %s206 = sphi 0, %s192
      %s210 = sphi 0, %s210
      %s212 = sphi 0, %s210
      %s213 = sphi 0, %s212
      %s227 = sphi 0, %s213
      %s231 = sphi 0, %s231
      %s233 = sphi 0, %s231
      %s234 = sphi 0, %s233
      %s248 = sphi 0, %s234
      %s252 = sphi 0, %s252
      %s254 = sphi 0, %s252
      %s255 = sphi 0, %s254
      %s269 = sphi 0, %s255
      %s273 = sphi 0, %s273
      %s275 = sphi 0, %s273
      %s276 = sphi 0, %s275
      %s290 = sphi 0, %s276
      %s294 = sphi 0, %s294
      %s296 = sphi 0, %s294
      %s297 = sphi 0, %s296
      %s311 = sphi 0, %s297
      %s317 = sphi 0, %s319
      %s320 = sphi 0, %s317
      %s321 = sphi 0, %s320
      %s337 = sphi 0, %s321
      %s343 = sphi 0, %s345
      %s346 = sphi 0, %s343
      %s347 = sphi 0, %s346
      %s363 = sphi 0, %s347
    $region4: #{mlstm_block.2} parent=1 // loop_header_branch
      %32 = sbr.rel (%p30) target = $region8
    $region5: #{mlstm_block.2} parent=1 // loop_body
      %s34 = ssub.s32 %s29, 1
      %s35 = ssub.s32 %s29, 2
      %s36 = sadd.s32 %s29, 1
      %s37 = ssub.s32 %s29, %s36
      %p38 = scmp.eq.s32.totalorder %s37, 0
      %s40 = sadd.s32 %s39, 1
      %s41 = scalar_select %p38, %s39, %s40
      %p44 = pneg %p38
      %p45 = scmp.eq.s32.totalorder %s29, 1
      %p46 = por %p44, %p45
      %p47 = scmp.ne.s32.totalorder %s39, %s42
      %p48 = scmp.eq.s32.totalorder %s29, 0
      %p49 = por %p47, %p48
      %p50 = scmp.ne.s32.totalorder %s39, %s42
      %p51 = scmp.eq.s32.totalorder %s34, 1
      %p52 = por %p50, %p51
      %p53 = scmp.ne.s32.totalorder %s42, %s43
      %p54 = scmp.eq.s32.totalorder %s34, 0
      %p55 = por %p53, %p54
      %p56 = scmp.ne.s32.totalorder %s42, %s43
      %p57 = scmp.eq.s32.totalorder %s35, 1
      %p58 = por %p56, %p57
      %p60 = scmp.ne.s32.totalorder %s43, %s59
      %p61 = scmp.eq.s32.totalorder %s35, 0
      %p62 = por %p60, %p61
      %s64 = sadd.s32 %s63, 1
      %p67 = scmp.eq.s32.totalorder %s29, 1
      %p68 = scmp.ne.s32.totalorder %s63, %s65
      %p69 = scmp.eq.s32.totalorder %s29, 0
      %p70 = por %p68, %p69
      %p71 = scmp.ne.s32.totalorder %s63, %s65
      %p72 = scmp.eq.s32.totalorder %s34, 1
      %p73 = por %p71, %p72
      %p74 = scmp.ne.s32.totalorder %s65, %s66
      %p75 = scmp.eq.s32.totalorder %s34, 0
      %p76 = por %p74, %p75
      %p77 = scmp.ne.s32.totalorder %s65, %s66
      %p78 = scmp.eq.s32.totalorder %s35, 1
      %p79 = por %p77, %p78
      %p81 = scmp.ne.s32.totalorder %s66, %s80
      %p82 = scmp.eq.s32.totalorder %s35, 0
      %p83 = por %p81, %p82
      %s85 = sadd.s32 %s84, 1
      %p88 = scmp.eq.s32.totalorder %s29, 1
      %p89 = scmp.ne.s32.totalorder %s84, %s86
      %p90 = scmp.eq.s32.totalorder %s29, 0
      %p91 = por %p89, %p90
      %p92 = scmp.ne.s32.totalorder %s84, %s86
      %p93 = scmp.eq.s32.totalorder %s34, 1
      %p94 = por %p92, %p93
      %p95 = scmp.ne.s32.totalorder %s86, %s87
      %p96 = scmp.eq.s32.totalorder %s34, 0
      %p97 = por %p95, %p96
      %p98 = scmp.ne.s32.totalorder %s86, %s87
      %p99 = scmp.eq.s32.totalorder %s35, 1
      %p100 = por %p98, %p99
      %p102 = scmp.ne.s32.totalorder %s87, %s101
      %p103 = scmp.eq.s32.totalorder %s35, 0
      %p104 = por %p102, %p103
      %s106 = sadd.s32 %s105, 1
      %p109 = scmp.eq.s32.totalorder %s29, 1
      %p110 = scmp.ne.s32.totalorder %s105, %s107
      %p111 = scmp.eq.s32.totalorder %s29, 0
      %p112 = por %p110, %p111
      %p113 = scmp.ne.s32.totalorder %s105, %s107
      %p114 = scmp.eq.s32.totalorder %s34, 1
      %p115 = por %p113, %p114
      %p116 = scmp.ne.s32.totalorder %s107, %s108
      %p117 = scmp.eq.s32.totalorder %s34, 0
      %p118 = por %p116, %p117
      %p119 = scmp.ne.s32.totalorder %s107, %s108
      %p120 = scmp.eq.s32.totalorder %s35, 1
      %p121 = por %p119, %p120
      %p123 = scmp.ne.s32.totalorder %s108, %s122
      %p124 = scmp.eq.s32.totalorder %s35, 0
      %p125 = por %p123, %p124
      %s127 = sadd.s32 %s126, 1
      %p130 = scmp.eq.s32.totalorder %s29, 1
      %p131 = scmp.ne.s32.totalorder %s126, %s128
      %p132 = scmp.eq.s32.totalorder %s29, 0
      %p133 = por %p131, %p132
      %p134 = scmp.ne.s32.totalorder %s126, %s128
      %p135 = scmp.eq.s32.totalorder %s34, 1
      %p136 = por %p134, %p135
      %p137 = scmp.ne.s32.totalorder %s128, %s129
      %p138 = scmp.eq.s32.totalorder %s34, 0
      %p139 = por %p137, %p138
      %p140 = scmp.ne.s32.totalorder %s128, %s129
      %p141 = scmp.eq.s32.totalorder %s35, 1
      %p142 = por %p140, %p141
      %p144 = scmp.ne.s32.totalorder %s129, %s143
      %p145 = scmp.eq.s32.totalorder %s35, 0
      %p146 = por %p144, %p145
      %s148 = sadd.s32 %s147, 1
      %p151 = scmp.eq.s32.totalorder %s29, 1
      %p152 = scmp.ne.s32.totalorder %s147, %s149
      %p153 = scmp.eq.s32.totalorder %s29, 0
      %p154 = por %p152, %p153
      %p155 = scmp.ne.s32.totalorder %s147, %s149
      %p156 = scmp.eq.s32.totalorder %s34, 1
      %p157 = por %p155, %p156
      %p158 = scmp.ne.s32.totalorder %s149, %s150
      %p159 = scmp.eq.s32.totalorder %s34, 0
      %p160 = por %p158, %p159
      %p161 = scmp.ne.s32.totalorder %s149, %s150
      %p162 = scmp.eq.s32.totalorder %s35, 1
      %p163 = por %p161, %p162
      %p165 = scmp.ne.s32.totalorder %s150, %s164
      %p166 = scmp.eq.s32.totalorder %s35, 0
      %p167 = por %p165, %p166
      %s169 = sadd.s32 %s168, 1
      %p172 = scmp.eq.s32.totalorder %s29, 1
      %p173 = scmp.ne.s32.totalorder %s168, %s170
      %p174 = scmp.eq.s32.totalorder %s29, 0
      %p175 = por %p173, %p174
      %p176 = scmp.ne.s32.totalorder %s168, %s170
      %p177 = scmp.eq.s32.totalorder %s34, 1
      %p178 = por %p176, %p177
      %p179 = scmp.ne.s32.totalorder %s170, %s171
      %p180 = scmp.eq.s32.totalorder %s34, 0
      %p181 = por %p179, %p180
      %p182 = scmp.ne.s32.totalorder %s170, %s171
      %p183 = scmp.eq.s32.totalorder %s35, 1
      %p184 = por %p182, %p183
      %p186 = scmp.ne.s32.totalorder %s171, %s185
      %p187 = scmp.eq.s32.totalorder %s35, 0
      %p188 = por %p186, %p187
      %s190 = sadd.s32 %s189, 1
      %p193 = scmp.eq.s32.totalorder %s29, 1
      %p194 = scmp.ne.s32.totalorder %s189, %s191
      %p195 = scmp.eq.s32.totalorder %s29, 0
      %p196 = por %p194, %p195
      %p197 = scmp.ne.s32.totalorder %s189, %s191
      %p198 = scmp.eq.s32.totalorder %s34, 1
      %p199 = por %p197, %p198
      %p200 = scmp.ne.s32.totalorder %s191, %s192
      %p201 = scmp.eq.s32.totalorder %s34, 0
      %p202 = por %p200, %p201
      %p203 = scmp.ne.s32.totalorder %s191, %s192
      %p204 = scmp.eq.s32.totalorder %s35, 1
      %p205 = por %p203, %p204
      %p207 = scmp.ne.s32.totalorder %s192, %s206
      %p208 = scmp.eq.s32.totalorder %s35, 0
      %p209 = por %p207, %p208
      %s211 = sadd.s32 %s210, 1
      %p214 = scmp.eq.s32.totalorder %s29, 1
      %p215 = scmp.ne.s32.totalorder %s210, %s212
      %p216 = scmp.eq.s32.totalorder %s29, 0
      %p217 = por %p215, %p216
      %p218 = scmp.ne.s32.totalorder %s210, %s212
      %p219 = scmp.eq.s32.totalorder %s34, 1
      %p220 = por %p218, %p219
      %p221 = scmp.ne.s32.totalorder %s212, %s213
      %p222 = scmp.eq.s32.totalorder %s34, 0
      %p223 = por %p221, %p222
      %p224 = scmp.ne.s32.totalorder %s212, %s213
      %p225 = scmp.eq.s32.totalorder %s35, 1
      %p226 = por %p224, %p225
      %p228 = scmp.ne.s32.totalorder %s213, %s227
      %p229 = scmp.eq.s32.totalorder %s35, 0
      %p230 = por %p228, %p229
      %s232 = sadd.s32 %s231, 1
      %p235 = scmp.eq.s32.totalorder %s29, 1
      %p236 = scmp.ne.s32.totalorder %s231, %s233
      %p237 = scmp.eq.s32.totalorder %s29, 0
      %p238 = por %p236, %p237
      %p239 = scmp.ne.s32.totalorder %s231, %s233
      %p240 = scmp.eq.s32.totalorder %s34, 1
      %p241 = por %p239, %p240
      %p242 = scmp.ne.s32.totalorder %s233, %s234
      %p243 = scmp.eq.s32.totalorder %s34, 0
      %p244 = por %p242, %p243
      %p245 = scmp.ne.s32.totalorder %s233, %s234
      %p246 = scmp.eq.s32.totalorder %s35, 1
      %p247 = por %p245, %p246
      %p249 = scmp.ne.s32.totalorder %s234, %s248
      %p250 = scmp.eq.s32.totalorder %s35, 0
      %p251 = por %p249, %p250
      %s253 = sadd.s32 %s252, 1
      %p256 = scmp.eq.s32.totalorder %s29, 1
      %p257 = scmp.ne.s32.totalorder %s252, %s254
      %p258 = scmp.eq.s32.totalorder %s29, 0
      %p259 = por %p257, %p258
      %p260 = scmp.ne.s32.totalorder %s252, %s254
      %p261 = scmp.eq.s32.totalorder %s34, 1
      %p262 = por %p260, %p261
      %p263 = scmp.ne.s32.totalorder %s254, %s255
      %p264 = scmp.eq.s32.totalorder %s34, 0
      %p265 = por %p263, %p264
      %p266 = scmp.ne.s32.totalorder %s254, %s255
      %p267 = scmp.eq.s32.totalorder %s35, 1
      %p268 = por %p266, %p267
      %p270 = scmp.ne.s32.totalorder %s255, %s269
      %p271 = scmp.eq.s32.totalorder %s35, 0
      %p272 = por %p270, %p271
      %s274 = sadd.s32 %s273, 1
      %p277 = scmp.eq.s32.totalorder %s29, 1
      %p278 = scmp.ne.s32.totalorder %s273, %s275
      %p279 = scmp.eq.s32.totalorder %s29, 0
      %p280 = por %p278, %p279
      %p281 = scmp.ne.s32.totalorder %s273, %s275
      %p282 = scmp.eq.s32.totalorder %s34, 1
      %p283 = por %p281, %p282
      %p284 = scmp.ne.s32.totalorder %s275, %s276
      %p285 = scmp.eq.s32.totalorder %s34, 0
      %p286 = por %p284, %p285
      %p287 = scmp.ne.s32.totalorder %s275, %s276
      %p288 = scmp.eq.s32.totalorder %s35, 1
      %p289 = por %p287, %p288
      %p291 = scmp.ne.s32.totalorder %s276, %s290
      %p292 = scmp.eq.s32.totalorder %s35, 0
      %p293 = por %p291, %p292
      %s295 = sadd.s32 %s294, 1
      %p298 = scmp.eq.s32.totalorder %s29, 1
      %p299 = scmp.ne.s32.totalorder %s294, %s296
      %p300 = scmp.eq.s32.totalorder %s29, 0
      %p301 = por %p299, %p300
      %p302 = scmp.ne.s32.totalorder %s294, %s296
      %p303 = scmp.eq.s32.totalorder %s34, 1
      %p304 = por %p302, %p303
      %p305 = scmp.ne.s32.totalorder %s296, %s297
      %p306 = scmp.eq.s32.totalorder %s34, 0
      %p307 = por %p305, %p306
      %p308 = scmp.ne.s32.totalorder %s296, %s297
      %p309 = scmp.eq.s32.totalorder %s35, 1
      %p310 = por %p308, %p309
      %p312 = scmp.ne.s32.totalorder %s297, %s311
      %p313 = scmp.eq.s32.totalorder %s35, 0
      %p314 = por %p312, %p313
      %s315 = ssub.s32 %s29, %s36
      %p316 = scmp.eq.s32.totalorder %s315, 0
      %s318 = sadd.s32 %s317, 1
      %s319 = scalar_select %p316, %s317, %s318
      %p322 = pneg %p316
      %p323 = scmp.eq.s32.totalorder %s29, 1
      %p324 = por %p322, %p323
      %p325 = scmp.ne.s32.totalorder %s317, %s320
      %p326 = scmp.eq.s32.totalorder %s29, 0
      %p327 = por %p325, %p326
      %p328 = scmp.ne.s32.totalorder %s317, %s320
      %p329 = scmp.eq.s32.totalorder %s34, 1
      %p330 = por %p328, %p329
      %p331 = scmp.ne.s32.totalorder %s320, %s321
      %p332 = scmp.eq.s32.totalorder %s34, 0
      %p333 = por %p331, %p332
      %p334 = scmp.ne.s32.totalorder %s320, %s321
      %p335 = scmp.eq.s32.totalorder %s35, 1
      %p336 = por %p334, %p335
      %p338 = scmp.ne.s32.totalorder %s321, %s337
      %p339 = scmp.eq.s32.totalorder %s35, 0
      %p340 = por %p338, %p339
      %s341 = ssub.s32 %s29, %s36
      %p342 = scmp.eq.s32.totalorder %s341, 0
      %s344 = sadd.s32 %s343, 1
      %s345 = scalar_select %p342, %s343, %s344
      %p348 = pneg %p342
      %p349 = scmp.eq.s32.totalorder %s29, 1
      %p350 = por %p348, %p349
      %p351 = scmp.ne.s32.totalorder %s343, %s346
      %p352 = scmp.eq.s32.totalorder %s29, 0
      %p353 = por %p351, %p352
      %p354 = scmp.ne.s32.totalorder %s343, %s346
      %p355 = scmp.eq.s32.totalorder %s34, 1
      %p356 = por %p354, %p355
      %p357 = scmp.ne.s32.totalorder %s346, %s347
      %p358 = scmp.eq.s32.totalorder %s34, 0
      %p359 = por %p357, %p358
      %p360 = scmp.ne.s32.totalorder %s346, %s347
      %p361 = scmp.eq.s32.totalorder %s35, 1
      %p362 = por %p360, %p361
      %p364 = scmp.ne.s32.totalorder %s347, %s363
      %p365 = scmp.eq.s32.totalorder %s35, 0
      %p366 = por %p364, %p365
      %p367 = scmp.le.s32.totalorder 1, %s29
      %p368 = scmp.lt.s32.totalorder %s29, 3
      %p369 = pnand %p367, %p368
      %p370 = pneg %p369
      // Predicated region
      $region9: #{mlstm_block.2} parent=5 // pred_check
        _
      $region10: #{mlstm_block.2} parent=5 // pred_check_branch
        %372 = sbr.rel (%p369) target = $region12
      $region11: #{mlstm_block.2} parent=5 // pred_region
        %s373 = ssub.s32 %s29, 1
        // Predicated region
        $region13: #{mlstm_block.2} parent=11 // pred_check
          %p374 = pneg %p76
        $region14: #{mlstm_block.2} parent=11 // pred_check_branch
          %376 = sbr.rel (%p374) target = $region16
        $region15: #{mlstm_block.2} parent=11 // pred_region
          _
        $region16: #{mlstm_block.2} parent=11 // pred_fallthru
          _
        // Predicated region
        $region17: #{mlstm_block.2} parent=11 // pred_check
          %p377 = pneg %p97
        $region18: #{mlstm_block.2} parent=11 // pred_check_branch
          %379 = sbr.rel (%p377) target = $region20
        $region19: #{mlstm_block.2} parent=11 // pred_region
          %s381 = ssub.s32 16, 16
          %382 = vsyncadd [#allocation5], %s381
          %s384 = sshll.u32 [#allocation4], 4
          %s385 = int_to_ptr.vmem [resolvable:$true] %s384
          %387 = dma.hbm_to_vmem [thread:$0]  %s2, 16, %s385, [#allocation5]
        $region20: #{mlstm_block.2} parent=11 // pred_fallthru
          _
        // Predicated region
        $region21: #{mlstm_block.2} parent=11 // pred_check
          %p388 = pneg %p118
        $region22: #{mlstm_block.2} parent=11 // pred_check_branch
          %390 = sbr.rel (%p388) target = $region24
        $region23: #{mlstm_block.2} parent=11 // pred_region
          %s392 = ssub.s32 128, 128
          %393 = vsyncadd [#allocation5], %s392
          %s394 = sshll.u32 [#allocation6], 4
          %s395 = int_to_ptr.vmem [resolvable:$true] %s394
          %400 = dma.hbm_to_vmem [thread:$0]  %s3, 128, %s395, [#allocation5], 64, 64, 4
        $region24: #{mlstm_block.2} parent=11 // pred_fallthru
          _
        // Predicated region
        $region25: #{mlstm_block.2} parent=11 // pred_check
          %p401 = pneg %p139
        $region26: #{mlstm_block.2} parent=11 // pred_check_branch
          %403 = sbr.rel (%p401) target = $region28
        $region27: #{mlstm_block.2} parent=11 // pred_region
          %s405 = ssub.s32 16, 16
          %406 = vsyncadd [#allocation8], %s405
          %s408 = sshll.u32 [#allocation7], 4
          %s409 = int_to_ptr.vmem [resolvable:$true] %s408
          %411 = dma.hbm_to_vmem [thread:$0]  %s4, 16, %s409, [#allocation8]
        $region28: #{mlstm_block.2} parent=11 // pred_fallthru
          _
        // Predicated region
        $region29: #{mlstm_block.2} parent=11 // pred_check
          %p412 = pneg %p160
        $region30: #{mlstm_block.2} parent=11 // pred_check_branch
          %414 = sbr.rel (%p412) target = $region32
        $region31: #{mlstm_block.2} parent=11 // pred_region
          %s416 = ssub.s32 64, 64
          %417 = vsyncadd [#allocation8], %s416
          %s419 = sshll.u32 [#allocation9], 4
          %s420 = int_to_ptr.vmem [resolvable:$true] %s419
          %422 = dma.hbm_to_vmem [thread:$0]  %s5, 64, %s420, [#allocation8]
        $region32: #{mlstm_block.2} parent=11 // pred_fallthru
          _
        // Predicated region
        $region33: #{mlstm_block.2} parent=11 // pred_check
          %p423 = pneg %p181
        $region34: #{mlstm_block.2} parent=11 // pred_check_branch
          %425 = sbr.rel (%p423) target = $region36
        $region35: #{mlstm_block.2} parent=11 // pred_region
          %s427 = ssub.s32 16, 16
          %428 = vsyncadd [#allocation11], %s427
          %s430 = sshll.u32 [#allocation10], 4
          %s431 = int_to_ptr.vmem [resolvable:$true] %s430
          %433 = dma.hbm_to_vmem [thread:$0]  %s6, 16, %s431, [#allocation11]
        $region36: #{mlstm_block.2} parent=11 // pred_fallthru
          _
        // Predicated region
        $region37: #{mlstm_block.2} parent=11 // pred_check
          %p434 = pneg %p202
        $region38: #{mlstm_block.2} parent=11 // pred_check_branch
          %436 = sbr.rel (%p434) target = $region40
        $region39: #{mlstm_block.2} parent=11 // pred_region
          _
        $region40: #{mlstm_block.2} parent=11 // pred_fallthru
          _
        // Predicated region
        $region41: #{mlstm_block.2} parent=11 // pred_check
          %p437 = pneg %p223
        $region42: #{mlstm_block.2} parent=11 // pred_check_branch
          %439 = sbr.rel (%p437) target = $region44
        $region43: #{mlstm_block.2} parent=11 // pred_region
          %s441 = ssub.s32 32, 32
          %442 = vsyncadd [#allocation11], %s441
          %s444 = sshll.u32 [#allocation12], 4
          %s445 = int_to_ptr.vmem [resolvable:$true] %s444
          %447 = dma.hbm_to_vmem [thread:$0]  %s8, 32, %s445, [#allocation11]
        $region44: #{mlstm_block.2} parent=11 // pred_fallthru
          _
        // Predicated region
        $region45: #{mlstm_block.2} parent=11 // pred_check
          %p448 = pneg %p244
        $region46: #{mlstm_block.2} parent=11 // pred_check_branch
          %450 = sbr.rel (%p448) target = $region48
        $region47: #{mlstm_block.2} parent=11 // pred_region
          _
        $region48: #{mlstm_block.2} parent=11 // pred_fallthru
          _
        // Predicated region
        $region49: #{mlstm_block.2} parent=11 // pred_check
          %p451 = pneg %p265
        $region50: #{mlstm_block.2} parent=11 // pred_check_branch
          %453 = sbr.rel (%p451) target = $region52
        $region51: #{mlstm_block.2} parent=11 // pred_region
          %s455 = ssub.s32 16, 16
          %456 = vsyncadd [#allocation14], %s455
          %s458 = sshll.u32 [#allocation13], 4
          %s459 = int_to_ptr.vmem [resolvable:$true] %s458
          %461 = dma.hbm_to_vmem [thread:$0]  %s10, 16, %s459, [#allocation14]
        $region52: #{mlstm_block.2} parent=11 // pred_fallthru
          _
        // Predicated region
        $region53: #{mlstm_block.2} parent=11 // pred_check
          %p462 = pneg %p286
        $region54: #{mlstm_block.2} parent=11 // pred_check_branch
          %464 = sbr.rel (%p462) target = $region56
        $region55: #{mlstm_block.2} parent=11 // pred_region
          %s466 = ssub.s32 64, 64
          %467 = vsyncadd [#allocation14], %s466
          %s469 = sshll.u32 [#allocation15], 4
          %s470 = int_to_ptr.vmem [resolvable:$true] %s469
          %472 = dma.hbm_to_vmem [thread:$0]  %s11, 64, %s470, [#allocation14]
        $region56: #{mlstm_block.2} parent=11 // pred_fallthru
          _
        // Predicated region
        $region57: #{mlstm_block.2} parent=11 // pred_check
          %p473 = pneg %p307
        $region58: #{mlstm_block.2} parent=11 // pred_check_branch
          %475 = sbr.rel (%p473) target = $region60
        $region59: #{mlstm_block.2} parent=11 // pred_region
          %s477 = ssub.s32 64, 64
          %478 = vsyncadd [#allocation17], %s477
          %s480 = sshll.u32 [#allocation16], 4
          %s481 = int_to_ptr.vmem [resolvable:$true] %s480
          %483 = dma.hbm_to_vmem [thread:$0]  %s12, 64, %s481, [#allocation17]
        $region60: #{mlstm_block.2} parent=11 // pred_fallthru
          _
      $region12: #{mlstm_block.2} parent=5 // pred_fallthru
        _
      %p484 = scmp.lt.s32.totalorder %s29, 2
      // Predicated region
      $region61: #{mlstm_block.2} parent=5 // pred_check
        %p485 = pneg %p484
      $region62: #{mlstm_block.2} parent=5 // pred_check_branch
        %487 = sbr.rel (%p485) target = $region64
      $region63: #{mlstm_block.2} parent=5 // pred_region
        // Predicated region
        $region65: #{mlstm_block.2} parent=63 // pred_check
          %p488 = pneg %p49
        $region66: #{mlstm_block.2} parent=63 // pred_check_branch
          %490 = sbr.rel (%p488) target = $region68
        $region67: #{mlstm_block.2} parent=63 // pred_region
          %s491 = sand.u32 %s39, 1
          %s492 = scalar_lea.sflag [#allocation3], %s491
          %s493 = sand.u32 %s39, 1
          %s494 = smul.addr %s493, 8
          %s495 = scalar_lea.vmem [#allocation2], %s494
          %s497 = ssub.s32 128, 128
          %498 = vsyncadd %s492, %s497
          %s499 = smul.addr %s29, 128
          %s500 = scalar_lea.hbm %s0, %s499
          %s502 = sshll.u32 %s495, 4
          %s503 = int_to_ptr.vmem [resolvable:$true] %s502
          %505 = dma.hbm_to_vmem [thread:$0]  %s500, 128, %s503, %s492
        $region68: #{mlstm_block.2} parent=63 // pred_fallthru
          _
      $region64: #{mlstm_block.2} parent=5 // pred_fallthru
        _
      %p506 = scmp.le.s32.totalorder 1, %s29
      %p507 = scmp.lt.s32.totalorder %s29, 3
      %p508 = pnand %p506, %p507
      %p509 = pneg %p508
      // Predicated region
      $region69: #{mlstm_block.2} parent=5 // pred_check
        _
      $region70: #{mlstm_block.2} parent=5 // pred_check_branch
        %511 = sbr.rel (%p508) target = $region72
      $region71: #{mlstm_block.2} parent=5 // pred_region
        %s512 = ssub.s32 %s29, 1
        %s513 = sand.u32 %s42, 1
        %s514 = scalar_lea.sflag [#allocation3], %s513
        %s515 = sand.u32 %s42, 1
        %s516 = smul.addr %s515, 8
        %s517 = scalar_lea.vmem [#allocation2], %s516
        // Predicated region
        $region73: #{mlstm_block.2} parent=71 // pred_check
          %p518 = pneg %p55
        $region74: #{mlstm_block.2} parent=71 // pred_check_branch
          %520 = sbr.rel (%p518) target = $region76
        $region75: #{mlstm_block.2} parent=71 // pred_region
          %521 = dma.done %s514, 128
        $region76: #{mlstm_block.2} parent=71 // pred_fallthru
          _
        // Predicated region
        $region77: #{mlstm_block.2} parent=71 // pred_check
          %p522 = pneg %p97
        $region78: #{mlstm_block.2} parent=71 // pred_check_branch
          %524 = sbr.rel (%p522) target = $region80
        $region79: #{mlstm_block.2} parent=71 // pred_region
          %525 = dma.done [#allocation5], 16
        $region80: #{mlstm_block.2} parent=71 // pred_fallthru
          _
        // Predicated region
        $region81: #{mlstm_block.2} parent=71 // pred_check
          %p526 = pneg %p118
        $region82: #{mlstm_block.2} parent=71 // pred_check_branch
          %528 = sbr.rel (%p526) target = $region84
        $region83: #{mlstm_block.2} parent=71 // pred_region
          %529 = dma.done [#allocation5], 128
        $region84: #{mlstm_block.2} parent=71 // pred_fallthru
          _
        // Predicated region
        $region85: #{mlstm_block.2} parent=71 // pred_check
          %p530 = pneg %p139
        $region86: #{mlstm_block.2} parent=71 // pred_check_branch
          %532 = sbr.rel (%p530) target = $region88
        $region87: #{mlstm_block.2} parent=71 // pred_region
          %533 = dma.done [#allocation8], 16
        $region88: #{mlstm_block.2} parent=71 // pred_fallthru
          _
        // Predicated region
        $region89: #{mlstm_block.2} parent=71 // pred_check
          %p534 = pneg %p160
        $region90: #{mlstm_block.2} parent=71 // pred_check_branch
          %536 = sbr.rel (%p534) target = $region92
        $region91: #{mlstm_block.2} parent=71 // pred_region
          %537 = dma.done [#allocation8], 64
        $region92: #{mlstm_block.2} parent=71 // pred_fallthru
          _
        // Predicated region
        $region93: #{mlstm_block.2} parent=71 // pred_check
          %p538 = pneg %p181
        $region94: #{mlstm_block.2} parent=71 // pred_check_branch
          %540 = sbr.rel (%p538) target = $region96
        $region95: #{mlstm_block.2} parent=71 // pred_region
          %541 = dma.done [#allocation11], 16
        $region96: #{mlstm_block.2} parent=71 // pred_fallthru
          _
        // Predicated region
        $region97: #{mlstm_block.2} parent=71 // pred_check
          %p542 = pneg %p223
        $region98: #{mlstm_block.2} parent=71 // pred_check_branch
          %544 = sbr.rel (%p542) target = $region100
        $region99: #{mlstm_block.2} parent=71 // pred_region
          %545 = dma.done [#allocation11], 32
        $region100: #{mlstm_block.2} parent=71 // pred_fallthru
          _
        // Predicated region
        $region101: #{mlstm_block.2} parent=71 // pred_check
          %p546 = pneg %p265
        $region102: #{mlstm_block.2} parent=71 // pred_check_branch
          %548 = sbr.rel (%p546) target = $region104
        $region103: #{mlstm_block.2} parent=71 // pred_region
          %549 = dma.done [#allocation14], 16
        $region104: #{mlstm_block.2} parent=71 // pred_fallthru
          _
        // Predicated region
        $region105: #{mlstm_block.2} parent=71 // pred_check
          %p550 = pneg %p286
        $region106: #{mlstm_block.2} parent=71 // pred_check_branch
          %552 = sbr.rel (%p550) target = $region108
        $region107: #{mlstm_block.2} parent=71 // pred_region
          %553 = dma.done [#allocation14], 64
        $region108: #{mlstm_block.2} parent=71 // pred_fallthru
          _
        // Predicated region
        $region109: #{mlstm_block.2} parent=71 // pred_check
          %p554 = pneg %p307
        $region110: #{mlstm_block.2} parent=71 // pred_check_branch
          %556 = sbr.rel (%p554) target = $region112
        $region111: #{mlstm_block.2} parent=71 // pred_region
          %557 = dma.done [#allocation17], 64
        $region112: #{mlstm_block.2} parent=71 // pred_fallthru
          _
        %s558 = sand.u32 %s42, 1
        %s559 = scalar_lea.sflag [#allocation3], %s558
        %s560 = sand.u32 %s42, 1
        %s561 = smul.addr %s560, 8
        %s562 = scalar_lea.vmem [#allocation2], %s561
        %p563 = pneg %p55
        %p564 = pneg %p52
        %p565 = pneg %p76
        %p566 = pneg %p73
        %p567 = pneg %p97
        %p568 = pneg %p94
        %p569 = pneg %p118
        %p570 = pneg %p115
        %p571 = pneg %p139
        %p572 = pneg %p136
        %p573 = pneg %p160
        %p574 = pneg %p157
        %p575 = pneg %p181
        %p576 = pneg %p178
        %p577 = pneg %p202
        %p578 = pneg %p199
        %p579 = pneg %p223
        %p580 = pneg %p220
        %p581 = pneg %p244
        %p582 = pneg %p241
        %p583 = pneg %p265
        %p584 = pneg %p262
        %p585 = pneg %p286
        %p586 = pneg %p283
        %p587 = pneg %p307
        %p588 = pneg %p304
        %p589 = pneg %p333
        %p590 = pneg %p330
        %p591 = scmp.lt.s32.totalorder %s34, 1
        %s592 = scalar_select %p591, %s34, 1
        %s593 = smul.addr %s592, 4
        %s594 = smul.addr %s593, 8
        %s595 = scalar_lea.vmem %s13, %s594
        %p596 = pneg %p359
        %p597 = pneg %p356
        %p598 = scmp.lt.s32.totalorder %s34, 1
        %s599 = scalar_select %p598, %s34, 1
        %s600 = smul.addr %s599, 4
        %s601 = scalar_lea.vmem %s14, %s600
        %p602 = scmp.lt.s32.totalorder %s34, 1
        %s603 = scalar_select %p602, %s34, 1
        %s604 = smul.addr %s603, 4
        %s605 = smul.addr %s604, 8
        %s606 = scalar_lea.vmem %s13, %s605
        %p607 = scmp.lt.s32.totalorder %s34, 1
        %s608 = scalar_select %p607, %s34, 1
        %s609 = smul.addr %s608, 4
        %s610 = scalar_lea.vmem %s14, %s609
        %v612 = vld [vmem:[%s517] sm:$0xff]
        %v613 = vld [vmem:[%s1] sm:$0x1]
        %v614 = vld [vmem:[#allocation4] sm:$0x1]
        %vm615 = vcmask 130048
        %v616 = vsel %vm615, %v612, 0.0
        %617 = vadd.xlane.f32.xlu0 %v616
        %v618 = vpop.xlane.xlu0 %617
        %v619 = vrcp.pop 16.0
        %v620 = vmul.f32 %v618, %v619
        %v621 = vsub.f32 %v612, %v620
        %v622 = vmul.f32 %v621, %v621
        %v623 = vsel %vm615, %v622, 0.0
        %624 = vadd.xlane.f32.xlu0 %v623
        %v625 = vpop.xlane.xlu0 %624
        %v626 = vmul.f32 %v625, %v619
        %v627 = vadd.f32 %v626, 1e-05
        %v628 = vrsqrt.pop %v627
        %v629 = vmul.f32 %v621, %v628
        %v631 = vlaneseq
        %v632 = vshrl.u32 %v631, 7
        %v633 = vsub.s32 0, %v632
        %v634 = vrot.slane %v613, %v633
        %v636 = vmul.f32 %v629, %v634
        %v638 = vlaneseq
        %v639 = vshrl.u32 %v638, 7
        %v640 = vsub.s32 0, %v639
        %v641 = vrot.slane %v614, %v640
        %v643 = vadd.f32 %v636, %v641
        %v644 = vpack.c.bf16 %v643, %v643
        %v645 = vld [vmem:[#allocation6] sm:$0xf]
        %v646 = vld [vmem:[#allocation6 + $0x4] sm:$0xf]
        %v647 = vld [vmem:[#allocation7] sm:$0x1]
        %v649 = vlaneseq
        %v650 = vshrl.u32 %v649, 7
        %v651 = vsub.s32 0, %v650
        %v652 = vrot.slane %v647, %v651
        %v656 = vunpack.c.l.b16 %v645
        %v657 = vunpack.c.l.b16 %v646
        %v658 = vpack.c.b16 %v657, %v656
        %v661 = vsel %vm615, %v644, 0
        %663 = vmatprep.subr.bf16.mxu0 0
        %664 = vmatpush1.bf16.msra.mxu0 %v658
        %665 = vmatprep.subr.bf16.mxu0 0
        %666 = vmatpush1.bf16.msra.mxu0 0
        %667 = vmatprep.subr.bf16.mxu0 0
        %668 = vmatpush1.bf16.msra.mxu0 0
        %669 = vmatprep.subr.bf16.mxu0 0
        %670 = vmatpush1.bf16.msra.mxu0 0
        %671 = vmatprep.subr.bf16.mxu0 0
        %672 = vmatpush1.bf16.msra.mxu0 0
        %673 = vmatprep.subr.bf16.mxu0 0
        %674 = vmatpush1.bf16.msra.mxu0 0
        %675 = vmatprep.subr.bf16.mxu0 0
        %676 = vmatpush1.bf16.msra.mxu0 0
        %677 = vmatprep.subr.bf16.mxu0 0
        %678 = vmatpush1.bf16.msra.mxu0 0
        %679 = vmatprep.subr.bf16.mxu0 0
        %680 = vmatpush1.bf16.msra.mxu0 0
        %681 = vmatprep.subr.bf16.mxu0 0
        %682 = vmatpush1.bf16.msra.mxu0 0
        %683 = vmatprep.subr.bf16.mxu0 0
        %684 = vmatpush1.bf16.msra.mxu0 0
        %685 = vmatprep.subr.bf16.mxu0 0
        %686 = vmatpush1.bf16.msra.mxu0 0
        %687 = vmatprep.subr.bf16.mxu0 0
        %688 = vmatpush1.bf16.msra.mxu0 0
        %689 = vmatprep.subr.bf16.mxu0 0
        %690 = vmatpush1.bf16.msra.mxu0 0
        %691 = vmatprep.subr.bf16.mxu0 0
        %692 = vmatpush1.bf16.msra.mxu0 0
        %693 = vmatprep.subr.bf16.mxu0 0
        %694 = vmatpush1.bf16.msra.mxu0 0
        %695 = vmatprep.mubr.bf16.mxu0 0
        %696 = vmatmul.mubr.bf16.gmra.mrb[0].mxu0 %v661
        %v697 = vpop.f32.mrb[0].mxu0
        %v698 = vadd.f32 %v652, %v697
        %v699 = vpop.f32.mrb[0].mxu0
        %v700 = vpop.f32.mrb[0].mxu0
        %v701 = vpop.f32.mrb[0].mxu0
        %702 = vdwg.mxu0
        %v703 = vmul.f32 %v698, 0.5
        %v704 = vtanh.pop %v703
        %v705 = vadd.f32 %v704, 1.0
        %v706 = vmul.f32 %v705, 0.5
        %v707 = vmul.f32 %v698, %v706
        %v708 = vlaneseq
        %v709 = vshrl.u32 %v708, 7
        %vm710 = vcmp.eq.s32.totalorder %v709, 0
        %v711 = vrot.slane %v698, 7
        %v712 = vsel %vm710, 0.0, %v711
        %vm713 = vcmp.eq.s32.totalorder %v709, 7
        %v714 = vrot.slane %v698, 1
        %v715 = vsel %vm713, 0.0, %v714
        %v716 = vld [vmem:[#allocation9] sm:$0x1]
        %v717 = vlaneseq
        %v718 = vshrl.u32 %v717, 7
        %v719 = vsub.s32 0, %v718
        %v720 = vrot.slane %v716, %v719
        %v721 = vmul.f32 %v712, %v720
        %v722 = vld [vmem:[#allocation9 + $0x1] sm:$0x1]
        %v723 = vlaneseq
        %v724 = vshrl.u32 %v723, 7
        %v725 = vsub.s32 0, %v724
        %v726 = vrot.slane %v722, %v725
        %v727 = vmul.f32 %v698, %v726
        %v728 = vadd.f32 %v721, %v727
        %v729 = vld [vmem:[#allocation9 + $0x2] sm:$0x1]
        %v730 = vlaneseq
        %v731 = vshrl.u32 %v730, 7
        %v732 = vsub.s32 0, %v731
        %v733 = vrot.slane %v729, %v732
        %v734 = vmul.f32 %v715, %v733
        %v735 = vadd.f32 %v728, %v734
        %v736 = vld [vmem:[#allocation10] sm:$0x1]
        %v738 = vlaneseq
        %v739 = vshrl.u32 %v738, 7
        %v740 = vsub.s32 0, %v739
        %v741 = vrot.slane %v736, %v740
        %v743 = vadd.f32 %v735, %v741
        %v744 = vmul.f32 %v743, 0.5
        %v745 = vtanh.pop %v744
        %v746 = vadd.f32 %v745, 1.0
        %v747 = vmul.f32 %v746, 0.5
        %v748 = vmul.f32 %v743, %v747
        %v749 = vpack.c.bf16 %v748, %v748
        %v750 = vld [vmem:[%s7] sm:$0xff]
        %v751 = vld [vmem:[%s7 + $0x8] sm:$0xff]
        %v752 = vld [vmem:[%s7 + $0x10] sm:$0xff]
        %v753 = vld [vmem:[%s7 + $0x18] sm:$0xff]
        %v754 = vld [vmem:[#allocation12] sm:$0x3]
        %v756 = vlaneseq
        %v757 = vshrl.u32 %v756, 7
        %v758 = vsub.s32 0, %v757
        %v759 = vrot.slane %v754, %v758
        %v760 = vlaneseq
        %v761 = vshrl.u32 %v760, 7
        %v762 = vsub.s32 1, %v761
        %v763 = vrot.slane %v754, %v762
        %v770 = vunpack.c.l.b16 %v750
        %v771 = vunpack.c.h.b16 %v750
        %v772 = vunpack.c.l.b16 %v751
        %v773 = vunpack.c.h.b16 %v751
        %v774 = vunpack.c.l.b16 %v752
        %v775 = vunpack.c.h.b16 %v752
        %v776 = vunpack.c.l.b16 %v753
        %v777 = vunpack.c.h.b16 %v753
        %v778 = vpack.c.b16 %v772, %v770
        %v779 = vpack.c.b16 %v773, %v771
        %v780 = vpack.c.b16 %v776, %v774
        %v781 = vpack.c.b16 %v777, %v775
        %vm786 = vcmask 261120
        %v788 = vsel %vm786, %v749, 0
        %790 = vmatprep.subr.bf16.mxu0 %v779
        %791 = vmatpush1.bf16.msra.mxu0 %v778
        %792 = vmatprep.subr.bf16.mxu0 %v781
        %793 = vmatpush1.bf16.msra.mxu0 %v780
        %794 = vmatprep.subr.bf16.mxu0 0
        %795 = vmatpush1.bf16.msra.mxu0 0
        %796 = vmatprep.subr.bf16.mxu0 0
        %797 = vmatpush1.bf16.msra.mxu0 0
        %798 = vmatprep.subr.bf16.mxu0 0
        %799 = vmatpush1.bf16.msra.mxu0 0
        %800 = vmatprep.subr.bf16.mxu0 0
        %801 = vmatpush1.bf16.msra.mxu0 0
        %802 = vmatprep.subr.bf16.mxu0 0
        %803 = vmatpush1.bf16.msra.mxu0 0
        %804 = vmatprep.subr.bf16.mxu0 0
        %805 = vmatpush1.bf16.msra.mxu0 0
        %806 = vmatprep.subr.bf16.mxu0 0
        %807 = vmatpush1.bf16.msra.mxu0 0
        %808 = vmatprep.subr.bf16.mxu0 0
        %809 = vmatpush1.bf16.msra.mxu0 0
        %810 = vmatprep.subr.bf16.mxu0 0
        %811 = vmatpush1.bf16.msra.mxu0 0
        %812 = vmatprep.subr.bf16.mxu0 0
        %813 = vmatpush1.bf16.msra.mxu0 0
        %814 = vmatprep.subr.bf16.mxu0 0
        %815 = vmatpush1.bf16.msra.mxu0 0
        %816 = vmatprep.subr.bf16.mxu0 0
        %817 = vmatpush1.bf16.msra.mxu0 0
        %818 = vmatprep.subr.bf16.mxu0 0
        %819 = vmatpush1.bf16.msra.mxu0 0
        %820 = vmatprep.subr.bf16.mxu0 0
        %821 = vmatpush1.bf16.msra.mxu0 0
        %822 = vmatprep.mubr.bf16.mxu0 0
        %823 = vmatmul.mubr.bf16.gmra.mrb[0].mxu0 %v788
        %v824 = vpop.f32.mrb[0].mxu0
        %v825 = vadd.f32 %v759, %v824
        %v826 = vpop.f32.mrb[0].mxu0
        %v827 = vadd.f32 %v763, %v826
        %v828 = vpop.f32.mrb[0].mxu0
        %v829 = vpop.f32.mrb[0].mxu0
        %830 = vdwg.mxu0
        %v831 = vpack.c.bf16 %v698, %v698
        %v832 = vld [vmem:[%s9] sm:$0xf]
        %v833 = vld [vmem:[%s9 + $0x4] sm:$0xf]
        %v834 = vld [vmem:[%s9 + $0x8] sm:$0xf]
        %v835 = vld [vmem:[%s9 + $0xc] sm:$0xf]
        %v836 = vld [vmem:[#allocation13] sm:$0x1]
        %v838 = vlaneseq
        %v839 = vshrl.u32 %v838, 7
        %v840 = vsub.s32 0, %v839
        %v841 = vrot.slane %v836, %v840
        %v847 = vunpack.c.l.b16 %v832
        %v848 = vunpack.c.l.b16 %v833
        %v849 = vunpack.c.l.b16 %v834
        %v850 = vunpack.c.l.b16 %v835
        %v851 = vpack.c.b16 %v848, %v847
        %v852 = vpack.c.b16 %v850, %v849
        %v856 = vsel %vm786, %v831, 0
        %858 = vmatprep.subr.bf16.mxu0 0
        %859 = vmatpush1.bf16.msra.mxu0 %v851
        %860 = vmatprep.subr.bf16.mxu0 0
        %861 = vmatpush1.bf16.msra.mxu0 %v852
        %862 = vmatprep.subr.bf16.mxu0 0
        %863 = vmatpush1.bf16.msra.mxu0 0
        %864 = vmatprep.subr.bf16.mxu0 0
        %865 = vmatpush1.bf16.msra.mxu0 0
        %866 = vmatprep.subr.bf16.mxu0 0
        %867 = vmatpush1.bf16.msra.mxu0 0
        %868 = vmatprep.subr.bf16.mxu0 0
        %869 = vmatpush1.bf16.msra.mxu0 0
        %870 = vmatprep.subr.bf16.mxu0 0
        %871 = vmatpush1.bf16.msra.mxu0 0
        %872 = vmatprep.subr.bf16.mxu0 0
        %873 = vmatpush1.bf16.msra.mxu0 0
        %874 = vmatprep.subr.bf16.mxu0 0
        %875 = vmatpush1.bf16.msra.mxu0 0
        %876 = vmatprep.subr.bf16.mxu0 0
        %877 = vmatpush1.bf16.msra.mxu0 0
        %878 = vmatprep.subr.bf16.mxu0 0
        %879 = vmatpush1.bf16.msra.mxu0 0
        %880 = vmatprep.subr.bf16.mxu0 0
        %881 = vmatpush1.bf16.msra.mxu0 0
        %882 = vmatprep.subr.bf16.mxu0 0
        %883 = vmatpush1.bf16.msra.mxu0 0
        %884 = vmatprep.subr.bf16.mxu0 0
        %885 = vmatpush1.bf16.msra.mxu0 0
        %886 = vmatprep.subr.bf16.mxu0 0
        %887 = vmatpush1.bf16.msra.mxu0 0
        %888 = vmatprep.subr.bf16.mxu0 0
        %889 = vmatpush1.bf16.msra.mxu0 0
        %890 = vmatprep.mubr.bf16.mxu0 0
        %891 = vmatmul.mubr.bf16.gmra.mrb[0].mxu0 %v856
        %v892 = vpop.f32.mrb[0].mxu0
        %v893 = vadd.f32 %v841, %v892
        %v894 = vpop.f32.mrb[0].mxu0
        %v895 = vpop.f32.mrb[0].mxu0
        %v896 = vpop.f32.mrb[0].mxu0
        %897 = vdwg.mxu0
        %v898 = vld [vmem:[#allocation15] sm:$0x1]
        %v899 = vld [vmem:[#allocation16] sm:$0x1]
        %901 = vrot.lane.b32.xlu0 %v825, 32
        %v902 = vpop.permute.xlu0 %901
        %v904 = vsel %vm786, %v902, 0.0
        %905 = vadd.xlane.f32.xlu0 %v904
        %v906 = vpop.xlane.xlu0 %905
        %v907 = vrcp.pop 32.0
        %v908 = vmul.f32 %v906, %v907
        %v909 = vsub.f32 %v825, %v908
        %v910 = vmul.f32 %v909, %v909
        %912 = vrot.lane.b32.xlu0 %v910, 32
        %v913 = vpop.permute.xlu0 %912
        %v915 = vsel %vm786, %v913, 0.0
        %916 = vadd.xlane.f32.xlu0 %v915
        %v917 = vpop.xlane.xlu0 %916
        %v918 = vmul.f32 %v917, %v907
        %v919 = vadd.f32 %v918, 1e-05
        %v920 = vrsqrt.pop %v919
        %v921 = vmul.f32 %v909, %v920
        %v922 = vlaneseq
        %v923 = vshrl.u32 %v922, 7
        %v924 = vsub.s32 0, %v923
        %v925 = vrot.slane %v898, %v924
        %927 = vrot.lane.b32.xlu0 %v925, 96
        %v928 = vpop.permute.xlu0 %927
        %v930 = vmul.f32 %v921, %v928
        %v931 = vlaneseq
        %v932 = vshrl.u32 %v931, 7
        %v933 = vsub.s32 0, %v932
        %v934 = vrot.slane %v899, %v933
        %936 = vrot.lane.b32.xlu0 %v934, 96
        %v937 = vpop.permute.xlu0 %936
        %v939 = vadd.f32 %v930, %v937
        %v940 = vmul.f32 %v939, 1.442695
        %v941 = vpow.pop %v940
        %v942 = vld [vmem:[#allocation15 + $0x1] sm:$0x1]
        %v943 = vld [vmem:[#allocation16 + $0x1] sm:$0x1]
        %v944 = vsel %vm786, %v827, 0.0
        %945 = vadd.xlane.f32.xlu0 %v944
        %v946 = vpop.xlane.xlu0 %945
        %v947 = vmul.f32 %v946, %v907
        %v948 = vsub.f32 %v827, %v947
        %v949 = vmul.f32 %v948, %v948
        %v950 = vsel %vm786, %v949, 0.0
        %951 = vadd.xlane.f32.xlu0 %v950
        %v952 = vpop.xlane.xlu0 %951
        %v953 = vmul.f32 %v952, %v907
        %v954 = vadd.f32 %v953, 1e-05
        %v955 = vrsqrt.pop %v954
        %v956 = vmul.f32 %v948, %v955
        %v957 = vlaneseq
        %v958 = vshrl.u32 %v957, 7
        %v959 = vsub.s32 0, %v958
        %v960 = vrot.slane %v942, %v959
        %v961 = vmul.f32 %v956, %v960
        %v962 = vlaneseq
        %v963 = vshrl.u32 %v962, 7
        %v964 = vsub.s32 0, %v963
        %v965 = vrot.slane %v943, %v964
        %v966 = vadd.f32 %v961, %v965
        %v967 = vmul.f32 %v966, 0.5
        %v968 = vtanh.pop %v967
        %v969 = vadd.f32 %v968, 1.0
        %v970 = vmul.f32 %v969, 0.5
        %972 = vrot.lane.b32.xlu0 %v893, 96
        %v973 = vpop.permute.xlu0 %972
        %v975 = vmul.f32 %v941, %v973
        %v976 = vmul.f32 %v975, %v902
        %v977 = vld [vmem:[#allocation15 + $0x2] sm:$0x1]
        %v978 = vld [vmem:[#allocation16 + $0x2] sm:$0x1]
        %980 = vrot.lane.b32.xlu0 %v976, 32
        %v981 = vpop.permute.xlu0 %980
        %v983 = vsel %vm786, %v981, 0.0
        %984 = vadd.xlane.f32.xlu0 %v983
        %v985 = vpop.xlane.xlu0 %984
        %v986 = vmul.f32 %v985, %v907
        %v987 = vsub.f32 %v976, %v986
        %v988 = vmul.f32 %v987, %v987
        %990 = vrot.lane.b32.xlu0 %v988, 32
        %v991 = vpop.permute.xlu0 %990
        %v993 = vsel %vm786, %v991, 0.0
        %994 = vadd.xlane.f32.xlu0 %v993
        %v995 = vpop.xlane.xlu0 %994
        %v996 = vmul.f32 %v995, %v907
        %v997 = vadd.f32 %v996, 1e-05
        %v998 = vrsqrt.pop %v997
        %v999 = vmul.f32 %v987, %v998
        %v1000 = vlaneseq
        %v1001 = vshrl.u32 %v1000, 7
        %v1002 = vsub.s32 0, %v1001
        %v1003 = vrot.slane %v977, %v1002
        %1005 = vrot.lane.b32.xlu0 %v1003, 96
        %v1006 = vpop.permute.xlu0 %1005
        %v1008 = vmul.f32 %v999, %v1006
        %v1009 = vlaneseq
        %v1010 = vshrl.u32 %v1009, 7
        %v1011 = vsub.s32 0, %v1010
        %v1012 = vrot.slane %v978, %v1011
        %1014 = vrot.lane.b32.xlu0 %v1012, 96
        %v1015 = vpop.permute.xlu0 %1014
        %v1017 = vadd.f32 %v1008, %v1015
        %v1018 = vmul.f32 %v941, %v902
        %v1019 = vld [vmem:[#allocation15 + $0x3] sm:$0x1]
        %v1020 = vld [vmem:[#allocation16 + $0x3] sm:$0x1]
        %1022 = vrot.lane.b32.xlu0 %v1018, 32
        %v1023 = vpop.permute.xlu0 %1022
        %v1025 = vsel %vm786, %v1023, 0.0
        %1026 = vadd.xlane.f32.xlu0 %v1025
        %v1027 = vpop.xlane.xlu0 %1026
        %v1028 = vmul.f32 %v1027, %v907
        %v1029 = vsub.f32 %v1018, %v1028
        %v1030 = vmul.f32 %v1029, %v1029
        %1032 = vrot.lane.b32.xlu0 %v1030, 32
        %v1033 = vpop.permute.xlu0 %1032
        %v1035 = vsel %vm786, %v1033, 0.0
        %1036 = vadd.xlane.f32.xlu0 %v1035
        %v1037 = vpop.xlane.xlu0 %1036
        %v1038 = vmul.f32 %v1037, %v907
        %v1039 = vadd.f32 %v1038, 1e-05
        %v1040 = vrsqrt.pop %v1039
        %v1041 = vmul.f32 %v1029, %v1040
        %v1042 = vlaneseq
        %v1043 = vshrl.u32 %v1042, 7
        %v1044 = vsub.s32 0, %v1043
        %v1045 = vrot.slane %v1019, %v1044
        %1047 = vrot.lane.b32.xlu0 %v1045, 96
        %v1048 = vpop.permute.xlu0 %1047
        %v1050 = vmul.f32 %v1041, %v1048
        %v1051 = vlaneseq
        %v1052 = vshrl.u32 %v1051, 7
        %v1053 = vsub.s32 0, %v1052
        %v1054 = vrot.slane %v1020, %v1053
        %1056 = vrot.lane.b32.xlu0 %v1054, 96
        %v1057 = vpop.permute.xlu0 %1056
        %v1059 = vadd.f32 %v1050, %v1057
        %1060 = vrot.lane.b32.xlu0 %v825, 96
        %v1061 = vpop.permute.xlu0 %1060
        %1063 = vst.msk [vmem:[%s606] sm:$0xff] %vm786, %v1061
        %s1064 = scalar_lea.vmem %s606, 8
        %1065 = vst.msk [vmem:[%s1064] sm:$0xff] %vm786, %v970
        %s1066 = scalar_lea.vmem %s606, 16
        %1067 = vst.msk [vmem:[%s1066] sm:$0xff] %vm786, %v825
        %1069 = vrot.lane.b32.xlu0 %v707, 96
        %v1070 = vpop.permute.xlu0 %1069
        %s1072 = scalar_lea.vmem %s606, 24
        %1073 = vst.msk [vmem:[%s1072] sm:$0xff] %vm786, %v1070
        %vm1074 = vcmask 1048320
        %v1075 = vsel %vm1074, %v1017, 0.0
        %v1076 = vrot.slane %v1075, 4
        %v1077 = vadd.f32 %v1075, %v1076
        %v1078 = vrot.slane %v1077, 2
        %v1079 = vadd.f32 %v1077, %v1078
        %v1080 = vrot.slane %v1079, 1
        %v1081 = vadd.f32 %v1079, %v1080
        %v1082 = vsel %vm1074, %v1059, 0.0
        %v1083 = vrot.slane %v1082, 4
        %v1084 = vadd.f32 %v1082, %v1083
        %v1085 = vrot.slane %v1084, 2
        %v1086 = vadd.f32 %v1084, %v1085
        %v1087 = vrot.slane %v1086, 1
        %v1088 = vadd.f32 %v1086, %v1087
        %vm1089 = vcmask 523520
        %v1090 = vsel %vm1089, %v825, -inf
        %v1091 = vrot.slane %v1090, 4
        %v1092 = vmax.f32 %v1090, %v1091
        %v1093 = vrot.slane %v1092, 2
        %v1094 = vmax.f32 %v1092, %v1093
        %v1095 = vrot.slane %v1094, 1
        %v1096 = vmax.f32 %v1094, %v1095
        %v1097 = vsel %vm1089, %v825, inf
        %v1098 = vrot.slane %v1097, 4
        %v1099 = vmin.f32 %v1097, %v1098
        %v1100 = vrot.slane %v1099, 2
        %v1101 = vmin.f32 %v1099, %v1100
        %v1102 = vrot.slane %v1101, 1
        %v1103 = vmin.f32 %v1101, %v1102
        %1105 = vrot.lane.b32.xlu0 %v1096, 64
        %v1106 = vpop.permute.xlu0 %1105
        %1109 = vrot.lane.b32.xlu0 %v1103, 64
        %v1110 = vpop.permute.xlu0 %1109
        %vm1112 = vcmask 1040384
        %v1113 = vsel %vm1112, %v1081, %v1088
        %vm1114 = vcmask 1041408
        %v1115 = vsel %vm1114, %v1113, %v1106
        %vm1116 = vcmask 1042432
        %v1117 = vsel %vm1116, %v1115, %v1110
        %1119 = vrot.lane.b32.xlu0 %v1117, 32
        %v1120 = vpop.permute.xlu0 %1119
        %vm1122 = vcmask 257024
        %1123 = vst.msk [vmem:[%s610] sm:$0xf] %vm1122, %v1120
        %p1124 = scmp.lt.s32.totalorder %s34, 1
        %s1125 = scalar_select %p1124, %s34, 1
        %s1126 = smul.addr %s1125, 4
        %s1127 = smul.addr %s1126, 8
        %s1128 = scalar_lea.vmem %s13, %s1127
        %p1129 = scmp.lt.s32.totalorder %s34, 1
        %s1130 = scalar_select %p1129, %s34, 1
        %s1131 = smul.addr %s1130, 4
        %s1132 = scalar_lea.vmem %s14, %s1131
        // Predicated region
        $region113: #{mlstm_block.2} parent=71 // pred_check
          %p1133 = pneg %p330
        $region114: #{mlstm_block.2} parent=71 // pred_check_branch
          %1135 = sbr.rel (%p1133) target = $region116
        $region115: #{mlstm_block.2} parent=71 // pred_region
          _
        $region116: #{mlstm_block.2} parent=71 // pred_fallthru
          _
        // Predicated region
        $region117: #{mlstm_block.2} parent=71 // pred_check
          %p1136 = pneg %p356
        $region118: #{mlstm_block.2} parent=71 // pred_check_branch
          %1138 = sbr.rel (%p1136) target = $region120
        $region119: #{mlstm_block.2} parent=71 // pred_region
          _
        $region120: #{mlstm_block.2} parent=71 // pred_fallthru
          _
      $region72: #{mlstm_block.2} parent=5 // pred_fallthru
        _
      %p1139 = scmp.le.s32.totalorder 2, %s29
      // Predicated region
      $region121: #{mlstm_block.2} parent=5 // pred_check
        %p1140 = pneg %p1139
      $region122: #{mlstm_block.2} parent=5 // pred_check_branch
        %1142 = sbr.rel (%p1140) target = $region124
      $region123: #{mlstm_block.2} parent=5 // pred_region
        %s1143 = ssub.s32 %s29, 2
        // Predicated region
        $region125: #{mlstm_block.2} parent=123 // pred_check
          %p1144 = pneg %p336
        $region126: #{mlstm_block.2} parent=123 // pred_check_branch
          %1146 = sbr.rel (%p1144) target = $region128
        $region127: #{mlstm_block.2} parent=123 // pred_region
          %p1147 = scmp.lt.s32.totalorder %s35, 1
          %s1148 = scalar_select %p1147, %s35, 1
          %s1149 = smul.addr %s1148, 4
          %s1150 = smul.addr %s1149, 8
          %s1151 = scalar_lea.vmem %s13, %s1150
        $region128: #{mlstm_block.2} parent=123 // pred_fallthru
          _
        // Predicated region
        $region129: #{mlstm_block.2} parent=123 // pred_check
          %p1152 = pneg %p362
        $region130: #{mlstm_block.2} parent=123 // pred_check_branch
          %1154 = sbr.rel (%p1152) target = $region132
        $region131: #{mlstm_block.2} parent=123 // pred_region
          %p1155 = scmp.lt.s32.totalorder %s35, 1
          %s1156 = scalar_select %p1155, %s35, 1
          %s1157 = smul.addr %s1156, 4
          %s1158 = scalar_lea.vmem %s14, %s1157
        $region132: #{mlstm_block.2} parent=123 // pred_fallthru
          _
      $region124: #{mlstm_block.2} parent=5 // pred_fallthru
        _
    $region6: #{mlstm_block.2} parent=1 // loop_footer
      %s33 = sadd.s32 1, %s29
    $region7: #{mlstm_block.2} parent=1 // loop_footer_branch
      %28 = sbr.rel target = $region3
    $region8: #{mlstm_block.2} parent=1 // loop_exit
      _
    %1159 = vsyncpa [#allocation3], 1
    %s1160 = scalar_lea.sflag [#allocation3], 1
    %1161 = vsyncpa %s1160, 1
    %1162 = vsyncpa [#allocation5], 1
    %1163 = vsyncpa [#allocation8], 1
    %1164 = vsyncpa [#allocation11], 1
    %1165 = vsyncpa [#allocation14], 1
    %1166 = vsyncpa [#allocation17], 1

</llo_original>
